<compile_context>
chip_gen: v7x
topology: tpu7x:2x2x1
jax: 0.10.0
libtpu: 0.0.40
codegen_flags: <defaults>
</compile_context>

<pallas_src>
import functools

import jax
import jax.numpy as jnp
from jax import lax
from jax.experimental import pallas as pl
from jax.experimental.pallas import tpu as pltpu


def _sep_conv_kernel(xpad_ref, dw_ref, b1_ref, pw_ref, b2_ref, out_ref, *,
                     Cin, Cout, KH, KW, tile_h, Wo, stride, dilation):
    """One (batch, output-row-tile) step: depthwise + BN1 + ReLU + 1x1 + BN2 + ReLU."""
    i = pl.program_id(1)
    tile_in_h = (tile_h - 1) * stride + (KH - 1) * dilation + 1
    h0 = pl.multiple_of(i * (tile_h * stride), tile_h * stride)

    acc2 = [None] * Cout                                   # pointwise accumulators (VPU)
    for c in range(Cin):
        # Input rows needed by this output row-tile, channel c: (tile_in_h, Wp).
        xc = xpad_ref[0, c, pl.ds(h0, tile_in_h), :].astype(jnp.float32)

        # ---- depthwise conv for channel c (BN1 scale pre-folded into weights) ----
        acc1 = None
        for kh in range(KH):
            for kw in range(KW):
                sub = lax.slice(
                    xc,
                    (kh * dilation, kw * dilation),
                    (kh * dilation + (tile_h - 1) * stride + 1,
                     kw * dilation + (Wo - 1) * stride + 1),
                    (stride, stride))                      # (tile_h, Wo)
                w = dw_ref[c * KH * KW + kh * KW + kw]     # SMEM scalar
                term = sub * w
                acc1 = term if acc1 is None else acc1 + term

        # ---- BN1 shift + ReLU ----
        y1c = jnp.maximum(acc1 + b1_ref[c], 0.0)           # (tile_h, Wo)

        # ---- 1x1 pointwise conv, unrolled on the VPU (BN2 scale pre-folded) ----
        for co in range(Cout):
            t = y1c * pw_ref[co * Cin + c]                 # SMEM scalar
            acc2[co] = t if acc2[co] is None else acc2[co] + t

    # ---- BN2 shift + ReLU; ONE batched store per grid step (leading-dim stack) ----
    y2 = jnp.stack([jnp.maximum(acc2[co] + b2_ref[co], 0.0) for co in range(Cout)],
                   axis=0)                                 # (Cout, tile_h, Wo)
    out_ref[0, :, :, :] = y2.astype(out_ref.dtype)


def _vmem_block_bytes(shape, itemsize):
    """Bytes of a VMEM block after (sublane, lane) = (8, 128) padding."""
    dims = list(shape)
    if len(dims) >= 1:
        dims[-1] = pl.cdiv(dims[-1], 128) * 128
    if len(dims) >= 2:
        dims[-2] = pl.cdiv(dims[-2], 8) * 8
    n = 1
    for d in dims:
        n *= int(d)
    return n * itemsize


def _pick_tile_h(Ho, Wo, Cout, N):
    """Output-row tile size.

    Collapse the grid at small sizes (fixed ~0.35 us/step overhead dominates), keep
    >= 2 total parallel steps for v7x megacore when N == 1, and keep the BlockSpec
    legal (tile == Ho or tile % 8 == 0, tile | Ho).  Re-tiles rows for big images so
    the per-step output block stays within a modest VMEM budget.
    """
    cands = [t for t in range(1, Ho + 1) if Ho % t == 0 and (t == Ho or t % 8 == 0)]
    budget_rows = max(8, (2 << 20) // (4 * Cout * max(Wo, 128)))   # ~2 MiB f32 out block
    within = [t for t in cands if t <= budget_rows]
    tile = max(within) if within else min(cands)
    if N < 2 and tile == Ho:                               # keep both v7x TCs busy
        halves = [t for t in cands if t <= max(1, Ho // 2)]
        if halves:
            tile = max(halves)
    return tile


def separable_conv2d(x_nchw, dw_weight, pw_weight,
                     bn1_scale, bn1_shift, bn2_scale, bn2_shift,
                     *, stride=1, padding=0, dilation=1):
    """x_nchw: (N, Cin, H, W).  dw_weight: (Cin, KH, KW).  pw_weight: (Cout, Cin).
    Returns (N, Cout, Ho, Wo) (PyTorch NCHW convention), BN in eval semantics."""
    N, Cin, H, W = x_nchw.shape
    Cout = pw_weight.shape[0]
    KH, KW = dw_weight.shape[1], dw_weight.shape[2]
    Ho = (H + 2 * padding - dilation * (KH - 1) - 1) // stride + 1
    Wo = (W + 2 * padding - dilation * (KW - 1) - 1) // stride + 1

    # One-time folding of BN (eval) scales into the conv weights (tiny tensors).
    dw_folded = dw_weight.astype(jnp.float32) * bn1_scale.astype(jnp.float32)[:, None, None]
    pw_folded = pw_weight.astype(jnp.float32) * bn2_scale.astype(jnp.float32)[:, None]
    dw_flat = dw_folded.reshape(Cin * KH * KW)
    pw_flat = pw_folded.reshape(Cout * Cin)
    b1 = bn1_shift.astype(jnp.float32)                     # (Cin,)
    b2 = bn2_shift.astype(jnp.float32)                     # (Cout,)

    # TODO(synk): move this spatial zero-pad into the kernel (halo'd row tiles +
    #             in-kernel memset) for large images; negligible at 16x16.
    xp = jnp.pad(x_nchw, ((0, 0), (0, 0), (padding, padding), (padding, padding)))
    Hp, Wp = xp.shape[2], xp.shape[3]

    tile_h = _pick_tile_h(Ho, Wo, Cout, N)
    n_tiles = Ho // tile_h

    kernel = functools.partial(
        _sep_conv_kernel, Cin=Cin, Cout=Cout, KH=KH, KW=KW,
        tile_h=tile_h, Wo=Wo, stride=stride, dilation=dilation)

    smem = pl.BlockSpec(memory_space=pltpu.MemorySpace.SMEM)

    # Right-size the scoped-VMEM limit from the actual blocks (double-buffered) + slack.
    itemsize = jnp.dtype(x_nchw.dtype).itemsize
    in_block_bytes = _vmem_block_bytes((Cin, Hp, Wp), itemsize)
    out_block_bytes = _vmem_block_bytes((Cout, tile_h, Wo), itemsize)
    vmem_limit = 2 * in_block_bytes + 2 * out_block_bytes + (4 << 20)
    vmem_limit = int(min(max(vmem_limit, 8 << 20), 100 << 20))

    flops = 2 * N * Ho * Wo * (Cin * KH * KW + Cin * Cout)
    bytes_accessed = int(xp.size) * itemsize + N * Cout * Ho * Wo * itemsize

    return pl.pallas_call(
        kernel,
        out_shape=jax.ShapeDtypeStruct((N, Cout, Ho, Wo), x_nchw.dtype),
        grid_spec=pltpu.PrefetchScalarGridSpec(
            num_scalar_prefetch=0,
            grid=(N, n_tiles),
            in_specs=[
                # Whole padded image per batch element (re-DMA'd only when n changes).
                pl.BlockSpec((1, Cin, Hp, Wp), lambda n, i: (n, 0, 0, 0)),
                smem,   # depthwise weights (BN1-scale folded), flat
                smem,   # BN1 shift
                smem,   # pointwise weights (BN2-scale folded), flat
                smem,   # BN2 shift
            ],
            out_specs=pl.BlockSpec((1, Cout, tile_h, Wo),
                                   lambda n, i: (n, 0, i, 0)),
        ),
        compiler_params=pltpu.CompilerParams(
            dimension_semantics=("parallel", "parallel"),
            vmem_limit_bytes=vmem_limit),
        cost_estimate=pl.CostEstimate(
            flops=int(flops), transcendentals=0, bytes_accessed=int(bytes_accessed)),
    )(xp, dw_flat, b1, pw_flat, b2)


def _reference(x, dw_w, pw_w, bn1_scale, bn1_shift, bn2_scale, bn2_shift,
               *, stride, padding, dilation):
    """Pure-JAX reference (same math, no Pallas) for the self-check."""
    N, Cin, H, W = x.shape
    Cout = pw_w.shape[0]
    KH, KW = dw_w.shape[1], dw_w.shape[2]
    Ho = (H + 2 * padding - dilation * (KH - 1) - 1) // stride + 1
    Wo = (W + 2 * padding - dilation * (KW - 1) - 1) // stride + 1
    xp = jnp.pad(x, ((0, 0), (0, 0), (padding, padding), (padding, padding)))
    acc = jnp.zeros((N, Cin, Ho, Wo), jnp.float32)
    for kh in range(KH):
        for kw in range(KW):
            sub = xp[:, :,
                     kh * dilation: kh * dilation + (Ho - 1) * stride + 1: stride,
                     kw * dilation: kw * dilation + (Wo - 1) * stride + 1: stride]
            acc = acc + sub * dw_w[None, :, kh, kw, None, None]
    y1 = jnp.maximum(acc * bn1_scale[None, :, None, None]
                     + bn1_shift[None, :, None, None], 0.0)
    y2 = jnp.einsum("nchw,oc->nohw", y1, pw_w)
    y2 = jnp.maximum(y2 * bn2_scale[None, :, None, None]
                     + bn2_shift[None, :, None, None], 0.0)
    return y2.astype(x.dtype)


if __name__ == "__main__":
    # SeparableConv2d(in_channels=4, out_channels=8, kernel_size=3,
    #                 stride=1, padding=1, dilation=1, bias=False)
    in_channels, out_channels = 4, 8
    kernel_size, stride, padding, dilation = 3, 1, 1, 1
    N, H, W = 2, 16, 16
    eps = 1e-5

    key = jax.random.PRNGKey(0)
    ks = jax.random.split(key, 6)

    # Input (PyTorch NCHW convention).
    x = jax.random.normal(ks[0], (N, in_channels, H, W), jnp.float32)

    # Depthwise conv weight: PyTorch (Cin, 1, KH, KW) -> (Cin, KH, KW).
    dw_w_torch = jax.random.normal(
        ks[1], (in_channels, 1, kernel_size, kernel_size), jnp.float32) * 0.3
    dw_weight = dw_w_torch[:, 0]

    # Pointwise conv weight: PyTorch (Cout, Cin, 1, 1) -> (Cout, Cin).
    pw_w_torch = jax.random.normal(
        ks[2], (out_channels, in_channels, 1, 1), jnp.float32) * 0.3
    pw_weight = pw_w_torch[:, :, 0, 0]

    # BatchNorm params (deterministic, non-trivial), folded to scale/shift (eval mode).
    def make_bn(k, c):
        k1, k2, k3, k4 = jax.random.split(k, 4)
        gamma = 1.0 + 0.1 * jax.random.normal(k1, (c,), jnp.float32)
        beta = 0.1 * jax.random.normal(k2, (c,), jnp.float32)
        rmean = 0.1 * jax.random.normal(k3, (c,), jnp.float32)
        rvar = 1.0 + 0.1 * jax.random.uniform(k4, (c,), jnp.float32)
        scale = gamma / jnp.sqrt(rvar + eps)
        shift = beta - rmean * scale
        return scale, shift

    bn1_scale, bn1_shift = make_bn(ks[3], in_channels)
    bn2_scale, bn2_shift = make_bn(ks[4], out_channels)

    out = separable_conv2d(
        x, dw_weight, pw_weight, bn1_scale, bn1_shift, bn2_scale, bn2_shift,
        stride=stride, padding=padding, dilation=dilation)
    out = jax.block_until_ready(out)

    ref = _reference(
        x, dw_weight, pw_weight, bn1_scale, bn1_shift, bn2_scale, bn2_shift,
        stride=stride, padding=padding, dilation=dilation)

    assert out.shape == (N, out_channels, H, W), out.shape
    assert jnp.allclose(out, ref, atol=1e-4, rtol=1e-4), "mismatch vs reference"
    print("KERNEL_OK")
</pallas_src>

<mosaic_0001>
module attributes {stable_mosaic.version = 11 : i64} {
  func.func @_sep_conv_kernel(%arg0: i32, %arg1: i32, %arg2: memref<1x4x18x18xf32, #tpu.memory_space<vmem>>, %arg3: memref<36xf32, #tpu.memory_space<smem>>, %arg4: memref<4xf32, #tpu.memory_space<smem>>, %arg5: memref<32xf32, #tpu.memory_space<smem>>, %arg6: memref<8xf32, #tpu.memory_space<smem>>, %arg7: memref<1x8x16x16xf32, #tpu.memory_space<vmem>>) attributes {dimension_semantics = [#tpu.dimension_semantics<parallel>, #tpu.dimension_semantics<parallel>], iteration_bounds = array<i64: 2, 1>, scalar_prefetch = 0 : i64, scratch_operands = 0 : i64, tpu.core_type = #tpu.core_type<tc>, window_params = [{transform_indices = @transform_0, window_bounds = array<i64: 1, 4, 18, 18>}, {transform_indices = @transform_1, window_bounds = array<i64: 36>}, {transform_indices = @transform_2, window_bounds = array<i64: 4>}, {transform_indices = @transform_3, window_bounds = array<i64: 32>}, {transform_indices = @transform_4, window_bounds = array<i64: 8>}, {transform_indices = @transform_5, window_bounds = array<i64: 1, 8, 16, 16>}]} {
    %c16_i32 = arith.constant 16 : i32
    %0 = arith.muli %arg1, %c16_i32 : i32
    %1 = tpu.assume_multiple %0, 16 : i32
    %c0 = arith.constant 0 : index
    %c0_0 = arith.constant 0 : index
    %2 = arith.index_cast %1 : i32 to index
    %c0_1 = arith.constant 0 : index
    %3 = vector.load %arg2[%c0, %c0_0, %2, %c0_1] : memref<1x4x18x18xf32, #tpu.memory_space<vmem>>, vector<1x1x18x18xf32>
    %4 = vector.shape_cast %3 : vector<1x1x18x18xf32> to vector<18x18xf32>
    %5 = vector.extract_strided_slice %4 {offsets = [0, 0], sizes = [16, 16], strides = [1, 1]} : vector<18x18xf32> to vector<16x16xf32>
    %c0_2 = arith.constant 0 : index
    %6 = memref.load %arg3[%c0_2] : memref<36xf32, #tpu.memory_space<smem>>
    %7 = vector.broadcast %6 : f32 to vector<16x16xf32>
    %8 = arith.mulf %5, %7 : vector<16x16xf32>
    %9 = vector.extract_strided_slice %4 {offsets = [0, 1], sizes = [16, 16], strides = [1, 1]} : vector<18x18xf32> to vector<16x16xf32>
    %c1 = arith.constant 1 : index
    %10 = memref.load %arg3[%c1] : memref<36xf32, #tpu.memory_space<smem>>
    %11 = vector.broadcast %10 : f32 to vector<16x16xf32>
    %12 = arith.mulf %9, %11 : vector<16x16xf32>
    %13 = arith.addf %8, %12 : vector<16x16xf32>
    %14 = vector.extract_strided_slice %4 {offsets = [0, 2], sizes = [16, 16], strides = [1, 1]} : vector<18x18xf32> to vector<16x16xf32>
    %c2 = arith.constant 2 : index
    %15 = memref.load %arg3[%c2] : memref<36xf32, #tpu.memory_space<smem>>
    %16 = vector.broadcast %15 : f32 to vector<16x16xf32>
    %17 = arith.mulf %14, %16 : vector<16x16xf32>
    %18 = arith.addf %13, %17 : vector<16x16xf32>
    %19 = vector.extract_strided_slice %4 {offsets = [1, 0], sizes = [16, 16], strides = [1, 1]} : vector<18x18xf32> to vector<16x16xf32>
    %c3 = arith.constant 3 : index
    %20 = memref.load %arg3[%c3] : memref<36xf32, #tpu.memory_space<smem>>
    %21 = vector.broadcast %20 : f32 to vector<16x16xf32>
    %22 = arith.mulf %19, %21 : vector<16x16xf32>
    %23 = arith.addf %18, %22 : vector<16x16xf32>
    %24 = vector.extract_strided_slice %4 {offsets = [1, 1], sizes = [16, 16], strides = [1, 1]} : vector<18x18xf32> to vector<16x16xf32>
    %c4 = arith.constant 4 : index
    %25 = memref.load %arg3[%c4] : memref<36xf32, #tpu.memory_space<smem>>
    %26 = vector.broadcast %25 : f32 to vector<16x16xf32>
    %27 = arith.mulf %24, %26 : vector<16x16xf32>
    %28 = arith.addf %23, %27 : vector<16x16xf32>
    %29 = vector.extract_strided_slice %4 {offsets = [1, 2], sizes = [16, 16], strides = [1, 1]} : vector<18x18xf32> to vector<16x16xf32>
    %c5 = arith.constant 5 : index
    %30 = memref.load %arg3[%c5] : memref<36xf32, #tpu.memory_space<smem>>
    %31 = vector.broadcast %30 : f32 to vector<16x16xf32>
    %32 = arith.mulf %29, %31 : vector<16x16xf32>
    %33 = arith.addf %28, %32 : vector<16x16xf32>
    %34 = vector.extract_strided_slice %4 {offsets = [2, 0], sizes = [16, 16], strides = [1, 1]} : vector<18x18xf32> to vector<16x16xf32>
    %c6 = arith.constant 6 : index
    %35 = memref.load %arg3[%c6] : memref<36xf32, #tpu.memory_space<smem>>
    %36 = vector.broadcast %35 : f32 to vector<16x16xf32>
    %37 = arith.mulf %34, %36 : vector<16x16xf32>
    %38 = arith.addf %33, %37 : vector<16x16xf32>
    %39 = vector.extract_strided_slice %4 {offsets = [2, 1], sizes = [16, 16], strides = [1, 1]} : vector<18x18xf32> to vector<16x16xf32>
    %c7 = arith.constant 7 : index
    %40 = memref.load %arg3[%c7] : memref<36xf32, #tpu.memory_space<smem>>
    %41 = vector.broadcast %40 : f32 to vector<16x16xf32>
    %42 = arith.mulf %39, %41 : vector<16x16xf32>
    %43 = arith.addf %38, %42 : vector<16x16xf32>
    %44 = vector.extract_strided_slice %4 {offsets = [2, 2], sizes = [16, 16], strides = [1, 1]} : vector<18x18xf32> to vector<16x16xf32>
    %c8 = arith.constant 8 : index
    %45 = memref.load %arg3[%c8] : memref<36xf32, #tpu.memory_space<smem>>
    %46 = vector.broadcast %45 : f32 to vector<16x16xf32>
    %47 = arith.mulf %44, %46 : vector<16x16xf32>
    %48 = arith.addf %43, %47 : vector<16x16xf32>
    %c0_3 = arith.constant 0 : index
    %49 = memref.load %arg4[%c0_3] : memref<4xf32, #tpu.memory_space<smem>>
    %50 = vector.broadcast %49 : f32 to vector<16x16xf32>
    %51 = arith.addf %48, %50 : vector<16x16xf32>
    %cst = arith.constant 0.000000e+00 : f32
    %52 = vector.broadcast %cst : f32 to vector<16x16xf32>
    %53 = arith.maximumf %51, %52 : vector<16x16xf32>
    %c0_4 = arith.constant 0 : index
    %54 = memref.load %arg5[%c0_4] : memref<32xf32, #tpu.memory_space<smem>>
    %55 = vector.broadcast %54 : f32 to vector<16x16xf32>
    %56 = arith.mulf %53, %55 : vector<16x16xf32>
    %c4_5 = arith.constant 4 : index
    %57 = memref.load %arg5[%c4_5] : memref<32xf32, #tpu.memory_space<smem>>
    %58 = vector.broadcast %57 : f32 to vector<16x16xf32>
    %59 = arith.mulf %53, %58 : vector<16x16xf32>
    %c8_6 = arith.constant 8 : index
    %60 = memref.load %arg5[%c8_6] : memref<32xf32, #tpu.memory_space<smem>>
    %61 = vector.broadcast %60 : f32 to vector<16x16xf32>
    %62 = arith.mulf %53, %61 : vector<16x16xf32>
    %c12 = arith.constant 12 : index
    %63 = memref.load %arg5[%c12] : memref<32xf32, #tpu.memory_space<smem>>
    %64 = vector.broadcast %63 : f32 to vector<16x16xf32>
    %65 = arith.mulf %53, %64 : vector<16x16xf32>
    %c16 = arith.constant 16 : index
    %66 = memref.load %arg5[%c16] : memref<32xf32, #tpu.memory_space<smem>>
    %67 = vector.broadcast %66 : f32 to vector<16x16xf32>
    %68 = arith.mulf %53, %67 : vector<16x16xf32>
    %c20 = arith.constant 20 : index
    %69 = memref.load %arg5[%c20] : memref<32xf32, #tpu.memory_space<smem>>
    %70 = vector.broadcast %69 : f32 to vector<16x16xf32>
    %71 = arith.mulf %53, %70 : vector<16x16xf32>
    %c24 = arith.constant 24 : index
    %72 = memref.load %arg5[%c24] : memref<32xf32, #tpu.memory_space<smem>>
    %73 = vector.broadcast %72 : f32 to vector<16x16xf32>
    %74 = arith.mulf %53, %73 : vector<16x16xf32>
    %c28 = arith.constant 28 : index
    %75 = memref.load %arg5[%c28] : memref<32xf32, #tpu.memory_space<smem>>
    %76 = vector.broadcast %75 : f32 to vector<16x16xf32>
    %77 = arith.mulf %53, %76 : vector<16x16xf32>
    %c0_7 = arith.constant 0 : index
    %c1_8 = arith.constant 1 : index
    %78 = arith.index_cast %1 : i32 to index
    %c0_9 = arith.constant 0 : index
    %79 = vector.load %arg2[%c0_7, %c1_8, %78, %c0_9] : memref<1x4x18x18xf32, #tpu.memory_space<vmem>>, vector<1x1x18x18xf32>
    %80 = vector.shape_cast %79 : vector<1x1x18x18xf32> to vector<18x18xf32>
    %81 = vector.extract_strided_slice %80 {offsets = [0, 0], sizes = [16, 16], strides = [1, 1]} : vector<18x18xf32> to vector<16x16xf32>
    %c9 = arith.constant 9 : index
    %82 = memref.load %arg3[%c9] : memref<36xf32, #tpu.memory_space<smem>>
    %83 = vector.broadcast %82 : f32 to vector<16x16xf32>
    %84 = arith.mulf %81, %83 : vector<16x16xf32>
    %85 = vector.extract_strided_slice %80 {offsets = [0, 1], sizes = [16, 16], strides = [1, 1]} : vector<18x18xf32> to vector<16x16xf32>
    %c10 = arith.constant 10 : index
    %86 = memref.load %arg3[%c10] : memref<36xf32, #tpu.memory_space<smem>>
    %87 = vector.broadcast %86 : f32 to vector<16x16xf32>
    %88 = arith.mulf %85, %87 : vector<16x16xf32>
    %89 = arith.addf %84, %88 : vector<16x16xf32>
    %90 = vector.extract_strided_slice %80 {offsets = [0, 2], sizes = [16, 16], strides = [1, 1]} : vector<18x18xf32> to vector<16x16xf32>
    %c11 = arith.constant 11 : index
    %91 = memref.load %arg3[%c11] : memref<36xf32, #tpu.memory_space<smem>>
    %92 = vector.broadcast %91 : f32 to vector<16x16xf32>
    %93 = arith.mulf %90, %92 : vector<16x16xf32>
    %94 = arith.addf %89, %93 : vector<16x16xf32>
    %95 = vector.extract_strided_slice %80 {offsets = [1, 0], sizes = [16, 16], strides = [1, 1]} : vector<18x18xf32> to vector<16x16xf32>
    %c12_10 = arith.constant 12 : index
    %96 = memref.load %arg3[%c12_10] : memref<36xf32, #tpu.memory_space<smem>>
    %97 = vector.broadcast %96 : f32 to vector<16x16xf32>
    %98 = arith.mulf %95, %97 : vector<16x16xf32>
    %99 = arith.addf %94, %98 : vector<16x16xf32>
    %100 = vector.extract_strided_slice %80 {offsets = [1, 1], sizes = [16, 16], strides = [1, 1]} : vector<18x18xf32> to vector<16x16xf32>
    %c13 = arith.constant 13 : index
    %101 = memref.load %arg3[%c13] : memref<36xf32, #tpu.memory_space<smem>>
    %102 = vector.broadcast %101 : f32 to vector<16x16xf32>
    %103 = arith.mulf %100, %102 : vector<16x16xf32>
    %104 = arith.addf %99, %103 : vector<16x16xf32>
    %105 = vector.extract_strided_slice %80 {offsets = [1, 2], sizes = [16, 16], strides = [1, 1]} : vector<18x18xf32> to vector<16x16xf32>
    %c14 = arith.constant 14 : index
    %106 = memref.load %arg3[%c14] : memref<36xf32, #tpu.memory_space<smem>>
    %107 = vector.broadcast %106 : f32 to vector<16x16xf32>
    %108 = arith.mulf %105, %107 : vector<16x16xf32>
    %109 = arith.addf %104, %108 : vector<16x16xf32>
    %110 = vector.extract_strided_slice %80 {offsets = [2, 0], sizes = [16, 16], strides = [1, 1]} : vector<18x18xf32> to vector<16x16xf32>
    %c15 = arith.constant 15 : index
    %111 = memref.load %arg3[%c15] : memref<36xf32, #tpu.memory_space<smem>>
    %112 = vector.broadcast %111 : f32 to vector<16x16xf32>
    %113 = arith.mulf %110, %112 : vector<16x16xf32>
    %114 = arith.addf %109, %113 : vector<16x16xf32>
    %115 = vector.extract_strided_slice %80 {offsets = [2, 1], sizes = [16, 16], strides = [1, 1]} : vector<18x18xf32> to vector<16x16xf32>
    %c16_11 = arith.constant 16 : index
    %116 = memref.load %arg3[%c16_11] : memref<36xf32, #tpu.memory_space<smem>>
    %117 = vector.broadcast %116 : f32 to vector<16x16xf32>
    %118 = arith.mulf %115, %117 : vector<16x16xf32>
    %119 = arith.addf %114, %118 : vector<16x16xf32>
    %120 = vector.extract_strided_slice %80 {offsets = [2, 2], sizes = [16, 16], strides = [1, 1]} : vector<18x18xf32> to vector<16x16xf32>
    %c17 = arith.constant 17 : index
    %121 = memref.load %arg3[%c17] : memref<36xf32, #tpu.memory_space<smem>>
    %122 = vector.broadcast %121 : f32 to vector<16x16xf32>
    %123 = arith.mulf %120, %122 : vector<16x16xf32>
    %124 = arith.addf %119, %123 : vector<16x16xf32>
    %c1_12 = arith.constant 1 : index
    %125 = memref.load %arg4[%c1_12] : memref<4xf32, #tpu.memory_space<smem>>
    %126 = vector.broadcast %125 : f32 to vector<16x16xf32>
    %127 = arith.addf %124, %126 : vector<16x16xf32>
    %cst_13 = arith.constant 0.000000e+00 : f32
    %128 = vector.broadcast %cst_13 : f32 to vector<16x16xf32>
    %129 = arith.maximumf %127, %128 : vector<16x16xf32>
    %c1_14 = arith.constant 1 : index
    %130 = memref.load %arg5[%c1_14] : memref<32xf32, #tpu.memory_space<smem>>
    %131 = vector.broadcast %130 : f32 to vector<16x16xf32>
    %132 = arith.mulf %129, %131 : vector<16x16xf32>
    %133 = arith.addf %56, %132 : vector<16x16xf32>
    %c5_15 = arith.constant 5 : index
    %134 = memref.load %arg5[%c5_15] : memref<32xf32, #tpu.memory_space<smem>>
    %135 = vector.broadcast %134 : f32 to vector<16x16xf32>
    %136 = arith.mulf %129, %135 : vector<16x16xf32>
    %137 = arith.addf %59, %136 : vector<16x16xf32>
    %c9_16 = arith.constant 9 : index
    %138 = memref.load %arg5[%c9_16] : memref<32xf32, #tpu.memory_space<smem>>
    %139 = vector.broadcast %138 : f32 to vector<16x16xf32>
    %140 = arith.mulf %129, %139 : vector<16x16xf32>
    %141 = arith.addf %62, %140 : vector<16x16xf32>
    %c13_17 = arith.constant 13 : index
    %142 = memref.load %arg5[%c13_17] : memref<32xf32, #tpu.memory_space<smem>>
    %143 = vector.broadcast %142 : f32 to vector<16x16xf32>
    %144 = arith.mulf %129, %143 : vector<16x16xf32>
    %145 = arith.addf %65, %144 : vector<16x16xf32>
    %c17_18 = arith.constant 17 : index
    %146 = memref.load %arg5[%c17_18] : memref<32xf32, #tpu.memory_space<smem>>
    %147 = vector.broadcast %146 : f32 to vector<16x16xf32>
    %148 = arith.mulf %129, %147 : vector<16x16xf32>
    %149 = arith.addf %68, %148 : vector<16x16xf32>
    %c21 = arith.constant 21 : index
    %150 = memref.load %arg5[%c21] : memref<32xf32, #tpu.memory_space<smem>>
    %151 = vector.broadcast %150 : f32 to vector<16x16xf32>
    %152 = arith.mulf %129, %151 : vector<16x16xf32>
    %153 = arith.addf %71, %152 : vector<16x16xf32>
    %c25 = arith.constant 25 : index
    %154 = memref.load %arg5[%c25] : memref<32xf32, #tpu.memory_space<smem>>
    %155 = vector.broadcast %154 : f32 to vector<16x16xf32>
    %156 = arith.mulf %129, %155 : vector<16x16xf32>
    %157 = arith.addf %74, %156 : vector<16x16xf32>
    %c29 = arith.constant 29 : index
    %158 = memref.load %arg5[%c29] : memref<32xf32, #tpu.memory_space<smem>>
    %159 = vector.broadcast %158 : f32 to vector<16x16xf32>
    %160 = arith.mulf %129, %159 : vector<16x16xf32>
    %161 = arith.addf %77, %160 : vector<16x16xf32>
    %c0_19 = arith.constant 0 : index
    %c2_20 = arith.constant 2 : index
    %162 = arith.index_cast %1 : i32 to index
    %c0_21 = arith.constant 0 : index
    %163 = vector.load %arg2[%c0_19, %c2_20, %162, %c0_21] : memref<1x4x18x18xf32, #tpu.memory_space<vmem>>, vector<1x1x18x18xf32>
    %164 = vector.shape_cast %163 : vector<1x1x18x18xf32> to vector<18x18xf32>
    %165 = vector.extract_strided_slice %164 {offsets = [0, 0], sizes = [16, 16], strides = [1, 1]} : vector<18x18xf32> to vector<16x16xf32>
    %c18 = arith.constant 18 : index
    %166 = memref.load %arg3[%c18] : memref<36xf32, #tpu.memory_space<smem>>
    %167 = vector.broadcast %166 : f32 to vector<16x16xf32>
    %168 = arith.mulf %165, %167 : vector<16x16xf32>
    %169 = vector.extract_strided_slice %164 {offsets = [0, 1], sizes = [16, 16], strides = [1, 1]} : vector<18x18xf32> to vector<16x16xf32>
    %c19 = arith.constant 19 : index
    %170 = memref.load %arg3[%c19] : memref<36xf32, #tpu.memory_space<smem>>
    %171 = vector.broadcast %170 : f32 to vector<16x16xf32>
    %172 = arith.mulf %169, %171 : vector<16x16xf32>
    %173 = arith.addf %168, %172 : vector<16x16xf32>
    %174 = vector.extract_strided_slice %164 {offsets = [0, 2], sizes = [16, 16], strides = [1, 1]} : vector<18x18xf32> to vector<16x16xf32>
    %c20_22 = arith.constant 20 : index
    %175 = memref.load %arg3[%c20_22] : memref<36xf32, #tpu.memory_space<smem>>
    %176 = vector.broadcast %175 : f32 to vector<16x16xf32>
    %177 = arith.mulf %174, %176 : vector<16x16xf32>
    %178 = arith.addf %173, %177 : vector<16x16xf32>
    %179 = vector.extract_strided_slice %164 {offsets = [1, 0], sizes = [16, 16], strides = [1, 1]} : vector<18x18xf32> to vector<16x16xf32>
    %c21_23 = arith.constant 21 : index
    %180 = memref.load %arg3[%c21_23] : memref<36xf32, #tpu.memory_space<smem>>
    %181 = vector.broadcast %180 : f32 to vector<16x16xf32>
    %182 = arith.mulf %179, %181 : vector<16x16xf32>
    %183 = arith.addf %178, %182 : vector<16x16xf32>
    %184 = vector.extract_strided_slice %164 {offsets = [1, 1], sizes = [16, 16], strides = [1, 1]} : vector<18x18xf32> to vector<16x16xf32>
    %c22 = arith.constant 22 : index
    %185 = memref.load %arg3[%c22] : memref<36xf32, #tpu.memory_space<smem>>
    %186 = vector.broadcast %185 : f32 to vector<16x16xf32>
    %187 = arith.mulf %184, %186 : vector<16x16xf32>
    %188 = arith.addf %183, %187 : vector<16x16xf32>
    %189 = vector.extract_strided_slice %164 {offsets = [1, 2], sizes = [16, 16], strides = [1, 1]} : vector<18x18xf32> to vector<16x16xf32>
    %c23 = arith.constant 23 : index
    %190 = memref.load %arg3[%c23] : memref<36xf32, #tpu.memory_space<smem>>
    %191 = vector.broadcast %190 : f32 to vector<16x16xf32>
    %192 = arith.mulf %189, %191 : vector<16x16xf32>
    %193 = arith.addf %188, %192 : vector<16x16xf32>
    %194 = vector.extract_strided_slice %164 {offsets = [2, 0], sizes = [16, 16], strides = [1, 1]} : vector<18x18xf32> to vector<16x16xf32>
    %c24_24 = arith.constant 24 : index
    %195 = memref.load %arg3[%c24_24] : memref<36xf32, #tpu.memory_space<smem>>
    %196 = vector.broadcast %195 : f32 to vector<16x16xf32>
    %197 = arith.mulf %194, %196 : vector<16x16xf32>
    %198 = arith.addf %193, %197 : vector<16x16xf32>
    %199 = vector.extract_strided_slice %164 {offsets = [2, 1], sizes = [16, 16], strides = [1, 1]} : vector<18x18xf32> to vector<16x16xf32>
    %c25_25 = arith.constant 25 : index
    %200 = memref.load %arg3[%c25_25] : memref<36xf32, #tpu.memory_space<smem>>
    %201 = vector.broadcast %200 : f32 to vector<16x16xf32>
    %202 = arith.mulf %199, %201 : vector<16x16xf32>
    %203 = arith.addf %198, %202 : vector<16x16xf32>
    %204 = vector.extract_strided_slice %164 {offsets = [2, 2], sizes = [16, 16], strides = [1, 1]} : vector<18x18xf32> to vector<16x16xf32>
    %c26 = arith.constant 26 : index
    %205 = memref.load %arg3[%c26] : memref<36xf32, #tpu.memory_space<smem>>
    %206 = vector.broadcast %205 : f32 to vector<16x16xf32>
    %207 = arith.mulf %204, %206 : vector<16x16xf32>
    %208 = arith.addf %203, %207 : vector<16x16xf32>
    %c2_26 = arith.constant 2 : index
    %209 = memref.load %arg4[%c2_26] : memref<4xf32, #tpu.memory_space<smem>>
    %210 = vector.broadcast %209 : f32 to vector<16x16xf32>
    %211 = arith.addf %208, %210 : vector<16x16xf32>
    %cst_27 = arith.constant 0.000000e+00 : f32
    %212 = vector.broadcast %cst_27 : f32 to vector<16x16xf32>
    %213 = arith.maximumf %211, %212 : vector<16x16xf32>
    %c2_28 = arith.constant 2 : index
    %214 = memref.load %arg5[%c2_28] : memref<32xf32, #tpu.memory_space<smem>>
    %215 = vector.broadcast %214 : f32 to vector<16x16xf32>
    %216 = arith.mulf %213, %215 : vector<16x16xf32>
    %217 = arith.addf %133, %216 : vector<16x16xf32>
    %c6_29 = arith.constant 6 : index
    %218 = memref.load %arg5[%c6_29] : memref<32xf32, #tpu.memory_space<smem>>
    %219 = vector.broadcast %218 : f32 to vector<16x16xf32>
    %220 = arith.mulf %213, %219 : vector<16x16xf32>
    %221 = arith.addf %137, %220 : vector<16x16xf32>
    %c10_30 = arith.constant 10 : index
    %222 = memref.load %arg5[%c10_30] : memref<32xf32, #tpu.memory_space<smem>>
    %223 = vector.broadcast %222 : f32 to vector<16x16xf32>
    %224 = arith.mulf %213, %223 : vector<16x16xf32>
    %225 = arith.addf %141, %224 : vector<16x16xf32>
    %c14_31 = arith.constant 14 : index
    %226 = memref.load %arg5[%c14_31] : memref<32xf32, #tpu.memory_space<smem>>
    %227 = vector.broadcast %226 : f32 to vector<16x16xf32>
    %228 = arith.mulf %213, %227 : vector<16x16xf32>
    %229 = arith.addf %145, %228 : vector<16x16xf32>
    %c18_32 = arith.constant 18 : index
    %230 = memref.load %arg5[%c18_32] : memref<32xf32, #tpu.memory_space<smem>>
    %231 = vector.broadcast %230 : f32 to vector<16x16xf32>
    %232 = arith.mulf %213, %231 : vector<16x16xf32>
    %233 = arith.addf %149, %232 : vector<16x16xf32>
    %c22_33 = arith.constant 22 : index
    %234 = memref.load %arg5[%c22_33] : memref<32xf32, #tpu.memory_space<smem>>
    %235 = vector.broadcast %234 : f32 to vector<16x16xf32>
    %236 = arith.mulf %213, %235 : vector<16x16xf32>
    %237 = arith.addf %153, %236 : vector<16x16xf32>
    %c26_34 = arith.constant 26 : index
    %238 = memref.load %arg5[%c26_34] : memref<32xf32, #tpu.memory_space<smem>>
    %239 = vector.broadcast %238 : f32 to vector<16x16xf32>
    %240 = arith.mulf %213, %239 : vector<16x16xf32>
    %241 = arith.addf %157, %240 : vector<16x16xf32>
    %c30 = arith.constant 30 : index
    %242 = memref.load %arg5[%c30] : memref<32xf32, #tpu.memory_space<smem>>
    %243 = vector.broadcast %242 : f32 to vector<16x16xf32>
    %244 = arith.mulf %213, %243 : vector<16x16xf32>
    %245 = arith.addf %161, %244 : vector<16x16xf32>
    %c0_35 = arith.constant 0 : index
    %c3_36 = arith.constant 3 : index
    %246 = arith.index_cast %1 : i32 to index
    %c0_37 = arith.constant 0 : index
    %247 = vector.load %arg2[%c0_35, %c3_36, %246, %c0_37] : memref<1x4x18x18xf32, #tpu.memory_space<vmem>>, vector<1x1x18x18xf32>
    %248 = vector.shape_cast %247 : vector<1x1x18x18xf32> to vector<18x18xf32>
    %249 = vector.extract_strided_slice %248 {offsets = [0, 0], sizes = [16, 16], strides = [1, 1]} : vector<18x18xf32> to vector<16x16xf32>
    %c27 = arith.constant 27 : index
    %250 = memref.load %arg3[%c27] : memref<36xf32, #tpu.memory_space<smem>>
    %251 = vector.broadcast %250 : f32 to vector<16x16xf32>
    %252 = arith.mulf %249, %251 : vector<16x16xf32>
    %253 = vector.extract_strided_slice %248 {offsets = [0, 1], sizes = [16, 16], strides = [1, 1]} : vector<18x18xf32> to vector<16x16xf32>
    %c28_38 = arith.constant 28 : index
    %254 = memref.load %arg3[%c28_38] : memref<36xf32, #tpu.memory_space<smem>>
    %255 = vector.broadcast %254 : f32 to vector<16x16xf32>
    %256 = arith.mulf %253, %255 : vector<16x16xf32>
    %257 = arith.addf %252, %256 : vector<16x16xf32>
    %258 = vector.extract_strided_slice %248 {offsets = [0, 2], sizes = [16, 16], strides = [1, 1]} : vector<18x18xf32> to vector<16x16xf32>
    %c29_39 = arith.constant 29 : index
    %259 = memref.load %arg3[%c29_39] : memref<36xf32, #tpu.memory_space<smem>>
    %260 = vector.broadcast %259 : f32 to vector<16x16xf32>
    %261 = arith.mulf %258, %260 : vector<16x16xf32>
    %262 = arith.addf %257, %261 : vector<16x16xf32>
    %263 = vector.extract_strided_slice %248 {offsets = [1, 0], sizes = [16, 16], strides = [1, 1]} : vector<18x18xf32> to vector<16x16xf32>
    %c30_40 = arith.constant 30 : index
    %264 = memref.load %arg3[%c30_40] : memref<36xf32, #tpu.memory_space<smem>>
    %265 = vector.broadcast %264 : f32 to vector<16x16xf32>
    %266 = arith.mulf %263, %265 : vector<16x16xf32>
    %267 = arith.addf %262, %266 : vector<16x16xf32>
    %268 = vector.extract_strided_slice %248 {offsets = [1, 1], sizes = [16, 16], strides = [1, 1]} : vector<18x18xf32> to vector<16x16xf32>
    %c31 = arith.constant 31 : index
    %269 = memref.load %arg3[%c31] : memref<36xf32, #tpu.memory_space<smem>>
    %270 = vector.broadcast %269 : f32 to vector<16x16xf32>
    %271 = arith.mulf %268, %270 : vector<16x16xf32>
    %272 = arith.addf %267, %271 : vector<16x16xf32>
    %273 = vector.extract_strided_slice %248 {offsets = [1, 2], sizes = [16, 16], strides = [1, 1]} : vector<18x18xf32> to vector<16x16xf32>
    %c32 = arith.constant 32 : index
    %274 = memref.load %arg3[%c32] : memref<36xf32, #tpu.memory_space<smem>>
    %275 = vector.broadcast %274 : f32 to vector<16x16xf32>
    %276 = arith.mulf %273, %275 : vector<16x16xf32>
    %277 = arith.addf %272, %276 : vector<16x16xf32>
    %278 = vector.extract_strided_slice %248 {offsets = [2, 0], sizes = [16, 16], strides = [1, 1]} : vector<18x18xf32> to vector<16x16xf32>
    %c33 = arith.constant 33 : index
    %279 = memref.load %arg3[%c33] : memref<36xf32, #tpu.memory_space<smem>>
    %280 = vector.broadcast %279 : f32 to vector<16x16xf32>
    %281 = arith.mulf %278, %280 : vector<16x16xf32>
    %282 = arith.addf %277, %281 : vector<16x16xf32>
    %283 = vector.extract_strided_slice %248 {offsets = [2, 1], sizes = [16, 16], strides = [1, 1]} : vector<18x18xf32> to vector<16x16xf32>
    %c34 = arith.constant 34 : index
    %284 = memref.load %arg3[%c34] : memref<36xf32, #tpu.memory_space<smem>>
    %285 = vector.broadcast %284 : f32 to vector<16x16xf32>
    %286 = arith.mulf %283, %285 : vector<16x16xf32>
    %287 = arith.addf %282, %286 : vector<16x16xf32>
    %288 = vector.extract_strided_slice %248 {offsets = [2, 2], sizes = [16, 16], strides = [1, 1]} : vector<18x18xf32> to vector<16x16xf32>
    %c35 = arith.constant 35 : index
    %289 = memref.load %arg3[%c35] : memref<36xf32, #tpu.memory_space<smem>>
    %290 = vector.broadcast %289 : f32 to vector<16x16xf32>
    %291 = arith.mulf %288, %290 : vector<16x16xf32>
    %292 = arith.addf %287, %291 : vector<16x16xf32>
    %c3_41 = arith.constant 3 : index
    %293 = memref.load %arg4[%c3_41] : memref<4xf32, #tpu.memory_space<smem>>
    %294 = vector.broadcast %293 : f32 to vector<16x16xf32>
    %295 = arith.addf %292, %294 : vector<16x16xf32>
    %cst_42 = arith.constant 0.000000e+00 : f32
    %296 = vector.broadcast %cst_42 : f32 to vector<16x16xf32>
    %297 = arith.maximumf %295, %296 : vector<16x16xf32>
    %c3_43 = arith.constant 3 : index
    %298 = memref.load %arg5[%c3_43] : memref<32xf32, #tpu.memory_space<smem>>
    %299 = vector.broadcast %298 : f32 to vector<16x16xf32>
    %300 = arith.mulf %297, %299 : vector<16x16xf32>
    %301 = arith.addf %217, %300 : vector<16x16xf32>
    %c7_44 = arith.constant 7 : index
    %302 = memref.load %arg5[%c7_44] : memref<32xf32, #tpu.memory_space<smem>>
    %303 = vector.broadcast %302 : f32 to vector<16x16xf32>
    %304 = arith.mulf %297, %303 : vector<16x16xf32>
    %305 = arith.addf %221, %304 : vector<16x16xf32>
    %c11_45 = arith.constant 11 : index
    %306 = memref.load %arg5[%c11_45] : memref<32xf32, #tpu.memory_space<smem>>
    %307 = vector.broadcast %306 : f32 to vector<16x16xf32>
    %308 = arith.mulf %297, %307 : vector<16x16xf32>
    %309 = arith.addf %225, %308 : vector<16x16xf32>
    %c15_46 = arith.constant 15 : index
    %310 = memref.load %arg5[%c15_46] : memref<32xf32, #tpu.memory_space<smem>>
    %311 = vector.broadcast %310 : f32 to vector<16x16xf32>
    %312 = arith.mulf %297, %311 : vector<16x16xf32>
    %313 = arith.addf %229, %312 : vector<16x16xf32>
    %c19_47 = arith.constant 19 : index
    %314 = memref.load %arg5[%c19_47] : memref<32xf32, #tpu.memory_space<smem>>
    %315 = vector.broadcast %314 : f32 to vector<16x16xf32>
    %316 = arith.mulf %297, %315 : vector<16x16xf32>
    %317 = arith.addf %233, %316 : vector<16x16xf32>
    %c23_48 = arith.constant 23 : index
    %318 = memref.load %arg5[%c23_48] : memref<32xf32, #tpu.memory_space<smem>>
    %319 = vector.broadcast %318 : f32 to vector<16x16xf32>
    %320 = arith.mulf %297, %319 : vector<16x16xf32>
    %321 = arith.addf %237, %320 : vector<16x16xf32>
    %c27_49 = arith.constant 27 : index
    %322 = memref.load %arg5[%c27_49] : memref<32xf32, #tpu.memory_space<smem>>
    %323 = vector.broadcast %322 : f32 to vector<16x16xf32>
    %324 = arith.mulf %297, %323 : vector<16x16xf32>
    %325 = arith.addf %241, %324 : vector<16x16xf32>
    %c31_50 = arith.constant 31 : index
    %326 = memref.load %arg5[%c31_50] : memref<32xf32, #tpu.memory_space<smem>>
    %327 = vector.broadcast %326 : f32 to vector<16x16xf32>
    %328 = arith.mulf %297, %327 : vector<16x16xf32>
    %329 = arith.addf %245, %328 : vector<16x16xf32>
    %c0_51 = arith.constant 0 : index
    %330 = memref.load %arg6[%c0_51] : memref<8xf32, #tpu.memory_space<smem>>
    %331 = vector.broadcast %330 : f32 to vector<16x16xf32>
    %332 = arith.addf %301, %331 : vector<16x16xf32>
    %cst_52 = arith.constant 0.000000e+00 : f32
    %333 = vector.broadcast %cst_52 : f32 to vector<16x16xf32>
    %334 = arith.maximumf %332, %333 : vector<16x16xf32>
    %c1_53 = arith.constant 1 : index
    %335 = memref.load %arg6[%c1_53] : memref<8xf32, #tpu.memory_space<smem>>
    %336 = vector.broadcast %335 : f32 to vector<16x16xf32>
    %337 = arith.addf %305, %336 : vector<16x16xf32>
    %cst_54 = arith.constant 0.000000e+00 : f32
    %338 = vector.broadcast %cst_54 : f32 to vector<16x16xf32>
    %339 = arith.maximumf %337, %338 : vector<16x16xf32>
    %c2_55 = arith.constant 2 : index
    %340 = memref.load %arg6[%c2_55] : memref<8xf32, #tpu.memory_space<smem>>
    %341 = vector.broadcast %340 : f32 to vector<16x16xf32>
    %342 = arith.addf %309, %341 : vector<16x16xf32>
    %cst_56 = arith.constant 0.000000e+00 : f32
    %343 = vector.broadcast %cst_56 : f32 to vector<16x16xf32>
    %344 = arith.maximumf %342, %343 : vector<16x16xf32>
    %c3_57 = arith.constant 3 : index
    %345 = memref.load %arg6[%c3_57] : memref<8xf32, #tpu.memory_space<smem>>
    %346 = vector.broadcast %345 : f32 to vector<16x16xf32>
    %347 = arith.addf %313, %346 : vector<16x16xf32>
    %cst_58 = arith.constant 0.000000e+00 : f32
    %348 = vector.broadcast %cst_58 : f32 to vector<16x16xf32>
    %349 = arith.maximumf %347, %348 : vector<16x16xf32>
    %c4_59 = arith.constant 4 : index
    %350 = memref.load %arg6[%c4_59] : memref<8xf32, #tpu.memory_space<smem>>
    %351 = vector.broadcast %350 : f32 to vector<16x16xf32>
    %352 = arith.addf %317, %351 : vector<16x16xf32>
    %cst_60 = arith.constant 0.000000e+00 : f32
    %353 = vector.broadcast %cst_60 : f32 to vector<16x16xf32>
    %354 = arith.maximumf %352, %353 : vector<16x16xf32>
    %c5_61 = arith.constant 5 : index
    %355 = memref.load %arg6[%c5_61] : memref<8xf32, #tpu.memory_space<smem>>
    %356 = vector.broadcast %355 : f32 to vector<16x16xf32>
    %357 = arith.addf %321, %356 : vector<16x16xf32>
    %cst_62 = arith.constant 0.000000e+00 : f32
    %358 = vector.broadcast %cst_62 : f32 to vector<16x16xf32>
    %359 = arith.maximumf %357, %358 : vector<16x16xf32>
    %c6_63 = arith.constant 6 : index
    %360 = memref.load %arg6[%c6_63] : memref<8xf32, #tpu.memory_space<smem>>
    %361 = vector.broadcast %360 : f32 to vector<16x16xf32>
    %362 = arith.addf %325, %361 : vector<16x16xf32>
    %cst_64 = arith.constant 0.000000e+00 : f32
    %363 = vector.broadcast %cst_64 : f32 to vector<16x16xf32>
    %364 = arith.maximumf %362, %363 : vector<16x16xf32>
    %c7_65 = arith.constant 7 : index
    %365 = memref.load %arg6[%c7_65] : memref<8xf32, #tpu.memory_space<smem>>
    %366 = vector.broadcast %365 : f32 to vector<16x16xf32>
    %367 = arith.addf %329, %366 : vector<16x16xf32>
    %cst_66 = arith.constant 0.000000e+00 : f32
    %368 = vector.broadcast %cst_66 : f32 to vector<16x16xf32>
    %369 = arith.maximumf %367, %368 : vector<16x16xf32>
    %370 = vector.shape_cast %334 : vector<16x16xf32> to vector<1x16x16xf32>
    %371 = vector.shape_cast %339 : vector<16x16xf32> to vector<1x16x16xf32>
    %372 = vector.shape_cast %344 : vector<16x16xf32> to vector<1x16x16xf32>
    %373 = vector.shape_cast %349 : vector<16x16xf32> to vector<1x16x16xf32>
    %374 = vector.shape_cast %354 : vector<16x16xf32> to vector<1x16x16xf32>
    %375 = vector.shape_cast %359 : vector<16x16xf32> to vector<1x16x16xf32>
    %376 = vector.shape_cast %364 : vector<16x16xf32> to vector<1x16x16xf32>
    %377 = vector.shape_cast %369 : vector<16x16xf32> to vector<1x16x16xf32>
    %378 = tpu.concatenate %370, %371, %372, %373, %374, %375, %376, %377 in 0 : vector<1x16x16xf32>, vector<1x16x16xf32>, vector<1x16x16xf32>, vector<1x16x16xf32>, vector<1x16x16xf32>, vector<1x16x16xf32>, vector<1x16x16xf32>, vector<1x16x16xf32> -> vector<8x16x16xf32>
    %c0_67 = arith.constant 0 : index
    %c0_68 = arith.constant 0 : index
    %c0_69 = arith.constant 0 : index
    %c0_70 = arith.constant 0 : index
    %379 = vector.load %arg7[%c0_67, %c0_68, %c0_69, %c0_70] : memref<1x8x16x16xf32, #tpu.memory_space<vmem>>, vector<1x8x16x16xf32>
    %380 = vector.shape_cast %379 : vector<1x8x16x16xf32> to vector<8x16x16xf32>
    %381 = vector.shape_cast %378 : vector<8x16x16xf32> to vector<1x8x16x16xf32>
    tpu.vector_store %arg7[%c0_67, %c0_68, %c0_69, %c0_70], %381 {strides = array<i32>} : memref<1x8x16x16xf32, #tpu.memory_space<vmem>>, vector<1x8x16x16xf32>,
    return
  }
  func.func @transform_0(%arg0: i32, %arg1: i32) -> (i32, i32, i32, i32) {
    %c0_i32 = arith.constant 0 : i32
    %c0_i32_0 = arith.constant 0 : i32
    %c0_i32_1 = arith.constant 0 : i32
    %c0_i32_2 = arith.constant 0 : i32
    return %arg0, %c0_i32, %c0_i32_0, %c0_i32_1 : i32, i32, i32, i32
  }
  func.func @transform_1(%arg0: i32, %arg1: i32) -> i32 {
    %c0_i32 = arith.constant 0 : i32
    %c0_i32_0 = arith.constant 0 : i32
    return %c0_i32 : i32
  }
  func.func @transform_2(%arg0: i32, %arg1: i32) -> i32 {
    %c0_i32 = arith.constant 0 : i32
    %c0_i32_0 = arith.constant 0 : i32
    return %c0_i32 : i32
  }
  func.func @transform_3(%arg0: i32, %arg1: i32) -> i32 {
    %c0_i32 = arith.constant 0 : i32
    %c0_i32_0 = arith.constant 0 : i32
    return %c0_i32 : i32
  }
  func.func @transform_4(%arg0: i32, %arg1: i32) -> i32 {
    %c0_i32 = arith.constant 0 : i32
    %c0_i32_0 = arith.constant 0 : i32
    return %c0_i32 : i32
  }
  func.func @transform_5(%arg0: i32, %arg1: i32) -> (i32, i32, i32, i32) {
    %c0_i32 = arith.constant 0 : i32
    %c0_i32_0 = arith.constant 0 : i32
    %c0_i32_1 = arith.constant 0 : i32
    return %arg0, %c0_i32, %arg1, %c0_i32_0 : i32, i32, i32, i32
  }
}

</mosaic_0001>

<llo_original>
// kernel: tpu_custom_call.1
$region0: #{tpu_custom_call.1}
  #allocation0 [shape = 'u32[]', space=smem, size = 0x4, offset = 0x4, fixed_abs, tag = 'smem constant byte address 0x4 - core index']
  #allocation1 [shape = 'u32[144,128]{1,0:T(1,128)}', space=vmem, size = 0x12000, scoped, tag = 'internal scratch']
  %s0 = inlined_call_operand.vmem [shape: f32[2,4,18,18], index: 0, kind: input, shape index: {}]
  %s1 = inlined_call_operand.vmem [shape: f32[36], index: 1, kind: input, shape index: {}]
  %s2 = inlined_call_operand.vmem [shape: f32[4], index: 2, kind: input, shape index: {}]
  %s3 = inlined_call_operand.vmem [shape: f32[32], index: 3, kind: input, shape index: {}]
  %s4 = inlined_call_operand.vmem [shape: f32[8], index: 4, kind: input, shape index: {}]
  %s5 = inlined_call_operand.hbm [shape: f32[2,8,16,16], index: 5, kind: output, shape index: {}]
  %s6 = sld [smem:[#allocation0]]
  $region69: #{tpu_custom_call.1} parent=0
    _
  %s8 = ssub.s32 1, %s6
  %s9 = scalar_select 0, %s8, %s6
  $region1: #{tpu_custom_call.1} parent=0
    #allocation2 [shape = 'u8[512]{0}', space=smem, size = 0x200, scoped, tag = 'input window, operand 1, single buffered']
    #allocation3 [shape = 's32[2]{0}', space=sflag, size = 0x8, scoped, tag = 'scoped memory for tpu_custom_call.1']
    #allocation4 [shape = 's32[2]{0}', space=sflag, size = 0x8, scoped, tag = 'scoped memory for tpu_custom_call.1']
    #allocation5 [shape = 'u8[512]{0}', space=smem, size = 0x200, scoped, tag = 'input window, operand 2, single buffered']
    #allocation6 [shape = 's32[1]{0}', space=sflag, size = 0x4, scoped, tag = 'scoped memory for tpu_custom_call.1']
    #allocation7 [shape = 'u8[512]{0}', space=smem, size = 0x200, scoped, tag = 'input window, operand 3, single buffered']
    #allocation8 [shape = 'u8[512]{0}', space=smem, size = 0x200, scoped, tag = 'input window, operand 4, single buffered']
    #allocation9 [shape = 's32[1]{0}', space=sflag, size = 0x4, scoped, tag = 'scoped memory for tpu_custom_call.1']
    #allocation10 [shape = 'u8[131072]{0}', space=vmem, size = 0x20000, scoped, tag = 'output window, operand 0']
    %10 = vsyncpa [#allocation4], 0
    %11 = vsyncpa [#allocation6], 0
    %12 = vsyncpa [#allocation9], 0
    %13 = vsyncpa [#allocation3], 0
    %s14 = scalar_lea.sflag [#allocation3], 1
    %15 = vsyncpa %s14, 0
    loop: start=0, step=1, limit=4
    $region2: #{tpu_custom_call.1} parent=1 // loop_pre_header
      _
    $region3: #{tpu_custom_call.1} parent=1 // loop_header
      %s17 = sphi 0, %s21
      %p18 = scmp.ge.s32.totalorder %s17, 4
      %s24 = sphi 0, %s36
      %s25 = sphi 0, %s32
      %s26 = sphi 0, %s24
      %s27 = sphi 0, %s25
      %s28 = sphi 0, %s26
      %s29 = sphi 0, %s27
      %s39 = sphi 0, %s41
      %s42 = sphi 0, %s39
      %s43 = sphi 0, %s42
      %s59 = sphi 0, %s43
      %s63 = sphi 0, %s63
      %s65 = sphi 0, %s63
      %s66 = sphi 0, %s65
      %s80 = sphi 0, %s66
      %s84 = sphi 0, %s84
      %s86 = sphi 0, %s84
      %s87 = sphi 0, %s86
      %s101 = sphi 0, %s87
      %s105 = sphi 0, %s105
      %s107 = sphi 0, %s105
      %s108 = sphi 0, %s107
      %s122 = sphi 0, %s108
      %s126 = sphi 0, %s126
      %s128 = sphi 0, %s126
      %s129 = sphi 0, %s128
      %s143 = sphi 0, %s129
      %s151 = sphi 0, %s153
      %s154 = sphi 0, %s151
      %s155 = sphi 0, %s154
      %s171 = sphi 0, %s155
    $region4: #{tpu_custom_call.1} parent=1 // loop_header_branch
      %20 = sbr.rel (%p18) target = $region8
    $region5: #{tpu_custom_call.1} parent=1 // loop_body
      %s22 = ssub.s32 %s17, 1
      %s23 = ssub.s32 %s17, 2
      %s30 = sadd.s32 1, %s25
      %p31 = scmp.ge.s32.totalorder %s30, 1
      %s32 = scalar_select %p31, 0, %s30
      %s33 = sadd.s32 1, %s24
      %s34 = scalar_select %p31, %s33, %s24
      %p35 = scmp.ge.s32.totalorder %s34, 2
      %s36 = scalar_select %p35, 0, %s34
      %s37 = ssub.s32 %s24, %s36
      %p38 = scmp.eq.s32.totalorder %s37, 0
      %s40 = sadd.s32 %s39, 1
      %s41 = scalar_select %p38, %s39, %s40
      %p44 = pneg %p38
      %p45 = scmp.eq.s32.totalorder %s17, 1
      %p46 = por %p44, %p45
      %p47 = scmp.ne.s32.totalorder %s39, %s42
      %p48 = scmp.eq.s32.totalorder %s17, 0
      %p49 = por %p47, %p48
      %p50 = scmp.ne.s32.totalorder %s39, %s42
      %p51 = scmp.eq.s32.totalorder %s22, 1
      %p52 = por %p50, %p51
      %p53 = scmp.ne.s32.totalorder %s42, %s43
      %p54 = scmp.eq.s32.totalorder %s22, 0
      %p55 = por %p53, %p54
      %p56 = scmp.ne.s32.totalorder %s42, %s43
      %p57 = scmp.eq.s32.totalorder %s23, 1
      %p58 = por %p56, %p57
      %p60 = scmp.ne.s32.totalorder %s43, %s59
      %p61 = scmp.eq.s32.totalorder %s23, 0
      %p62 = por %p60, %p61
      %s64 = sadd.s32 %s63, 1
      %p67 = scmp.eq.s32.totalorder %s17, 1
      %p68 = scmp.ne.s32.totalorder %s63, %s65
      %p69 = scmp.eq.s32.totalorder %s17, 0
      %p70 = por %p68, %p69
      %p71 = scmp.ne.s32.totalorder %s63, %s65
      %p72 = scmp.eq.s32.totalorder %s22, 1
      %p73 = por %p71, %p72
      %p74 = scmp.ne.s32.totalorder %s65, %s66
      %p75 = scmp.eq.s32.totalorder %s22, 0
      %p76 = por %p74, %p75
      %p77 = scmp.ne.s32.totalorder %s65, %s66
      %p78 = scmp.eq.s32.totalorder %s23, 1
      %p79 = por %p77, %p78
      %p81 = scmp.ne.s32.totalorder %s66, %s80
      %p82 = scmp.eq.s32.totalorder %s23, 0
      %p83 = por %p81, %p82
      %s85 = sadd.s32 %s84, 1
      %p88 = scmp.eq.s32.totalorder %s17, 1
      %p89 = scmp.ne.s32.totalorder %s84, %s86
      %p90 = scmp.eq.s32.totalorder %s17, 0
      %p91 = por %p89, %p90
      %p92 = scmp.ne.s32.totalorder %s84, %s86
      %p93 = scmp.eq.s32.totalorder %s22, 1
      %p94 = por %p92, %p93
      %p95 = scmp.ne.s32.totalorder %s86, %s87
      %p96 = scmp.eq.s32.totalorder %s22, 0
      %p97 = por %p95, %p96
      %p98 = scmp.ne.s32.totalorder %s86, %s87
      %p99 = scmp.eq.s32.totalorder %s23, 1
      %p100 = por %p98, %p99
      %p102 = scmp.ne.s32.totalorder %s87, %s101
      %p103 = scmp.eq.s32.totalorder %s23, 0
      %p104 = por %p102, %p103
      %s106 = sadd.s32 %s105, 1
      %p109 = scmp.eq.s32.totalorder %s17, 1
      %p110 = scmp.ne.s32.totalorder %s105, %s107
      %p111 = scmp.eq.s32.totalorder %s17, 0
      %p112 = por %p110, %p111
      %p113 = scmp.ne.s32.totalorder %s105, %s107
      %p114 = scmp.eq.s32.totalorder %s22, 1
      %p115 = por %p113, %p114
      %p116 = scmp.ne.s32.totalorder %s107, %s108
      %p117 = scmp.eq.s32.totalorder %s22, 0
      %p118 = por %p116, %p117
      %p119 = scmp.ne.s32.totalorder %s107, %s108
      %p120 = scmp.eq.s32.totalorder %s23, 1
      %p121 = por %p119, %p120
      %p123 = scmp.ne.s32.totalorder %s108, %s122
      %p124 = scmp.eq.s32.totalorder %s23, 0
      %p125 = por %p123, %p124
      %s127 = sadd.s32 %s126, 1
      %p130 = scmp.eq.s32.totalorder %s17, 1
      %p131 = scmp.ne.s32.totalorder %s126, %s128
      %p132 = scmp.eq.s32.totalorder %s17, 0
      %p133 = por %p131, %p132
      %p134 = scmp.ne.s32.totalorder %s126, %s128
      %p135 = scmp.eq.s32.totalorder %s22, 1
      %p136 = por %p134, %p135
      %p137 = scmp.ne.s32.totalorder %s128, %s129
      %p138 = scmp.eq.s32.totalorder %s22, 0
      %p139 = por %p137, %p138
      %p140 = scmp.ne.s32.totalorder %s128, %s129
      %p141 = scmp.eq.s32.totalorder %s23, 1
      %p142 = por %p140, %p141
      %p144 = scmp.ne.s32.totalorder %s129, %s143
      %p145 = scmp.eq.s32.totalorder %s23, 0
      %p146 = por %p144, %p145
      %s147 = ssub.s32 %s24, %s36
      %s148 = ssub.s32 %s25, %s32
      %s149 = sor.u32 %s147, %s148
      %p150 = scmp.eq.s32.totalorder %s149, 0
      %s152 = sadd.s32 %s151, 1
      %s153 = scalar_select %p150, %s151, %s152
      %p156 = pneg %p150
      %p157 = scmp.eq.s32.totalorder %s17, 1
      %p158 = por %p156, %p157
      %p159 = scmp.ne.s32.totalorder %s151, %s154
      %p160 = scmp.eq.s32.totalorder %s17, 0
      %p161 = por %p159, %p160
      %p162 = scmp.ne.s32.totalorder %s151, %s154
      %p163 = scmp.eq.s32.totalorder %s22, 1
      %p164 = por %p162, %p163
      %p165 = scmp.ne.s32.totalorder %s154, %s155
      %p166 = scmp.eq.s32.totalorder %s22, 0
      %p167 = por %p165, %p166
      %p168 = scmp.ne.s32.totalorder %s154, %s155
      %p169 = scmp.eq.s32.totalorder %s23, 1
      %p170 = por %p168, %p169
      %p172 = scmp.ne.s32.totalorder %s155, %s171
      %p173 = scmp.eq.s32.totalorder %s23, 0
      %p174 = por %p172, %p173
      %p175 = scmp.le.s32.totalorder 1, %s17
      %p176 = scmp.lt.s32.totalorder %s17, 3
      %p177 = pnand %p175, %p176
      %p178 = pneg %p177
      // Predicated region
      $region9: #{tpu_custom_call.1} parent=5 // pred_check
        _
      $region10: #{tpu_custom_call.1} parent=5 // pred_check_branch
        %180 = sbr.rel (%p177) target = $region12
      $region11: #{tpu_custom_call.1} parent=5 // pred_region
        %s181 = ssub.s32 %s17, 1
        // Predicated region
        $region13: #{tpu_custom_call.1} parent=11 // pred_check
          %p182 = pneg %p76
        $region14: #{tpu_custom_call.1} parent=11 // pred_check_branch
          %184 = sbr.rel (%p182) target = $region16
        $region15: #{tpu_custom_call.1} parent=11 // pred_region
          %s186 = ssub.s32 16, 16
          %187 = vsyncadd [#allocation4], %s186
          %s189 = sshll.u32 %s1, 4
          %s190 = int_to_ptr.vmem [resolvable:$true] %s189
          %192 = dma.vmem_to_smem %s190, 16, [#allocation2], [#allocation4]
        $region16: #{tpu_custom_call.1} parent=11 // pred_fallthru
          _
        // Predicated region
        $region17: #{tpu_custom_call.1} parent=11 // pred_check
          %p193 = pneg %p97
        $region18: #{tpu_custom_call.1} parent=11 // pred_check_branch
          %195 = sbr.rel (%p193) target = $region20
        $region19: #{tpu_custom_call.1} parent=11 // pred_region
          %s197 = ssub.s32 16, 16
          %198 = vsyncadd [#allocation6], %s197
          %s200 = sshll.u32 %s2, 4
          %s201 = int_to_ptr.vmem [resolvable:$true] %s200
          %203 = dma.vmem_to_smem %s201, 16, [#allocation5], [#allocation6]
        $region20: #{tpu_custom_call.1} parent=11 // pred_fallthru
          _
        // Predicated region
        $region21: #{tpu_custom_call.1} parent=11 // pred_check
          %p204 = pneg %p118
        $region22: #{tpu_custom_call.1} parent=11 // pred_check_branch
          %206 = sbr.rel (%p204) target = $region24
        $region23: #{tpu_custom_call.1} parent=11 // pred_region
          %s208 = ssub.s32 16, 16
          %209 = vsyncadd [#allocation6], %s208
          %s211 = sshll.u32 %s3, 4
          %s212 = int_to_ptr.vmem [resolvable:$true] %s211
          %214 = dma.vmem_to_smem %s212, 16, [#allocation7], [#allocation6]
        $region24: #{tpu_custom_call.1} parent=11 // pred_fallthru
          _
        // Predicated region
        $region25: #{tpu_custom_call.1} parent=11 // pred_check
          %p215 = pneg %p139
        $region26: #{tpu_custom_call.1} parent=11 // pred_check_branch
          %217 = sbr.rel (%p215) target = $region28
        $region27: #{tpu_custom_call.1} parent=11 // pred_region
          %s219 = ssub.s32 16, 16
          %220 = vsyncadd [#allocation9], %s219
          %s222 = sshll.u32 %s4, 4
          %s223 = int_to_ptr.vmem [resolvable:$true] %s222
          %225 = dma.vmem_to_smem %s223, 16, [#allocation8], [#allocation9]
        $region28: #{tpu_custom_call.1} parent=11 // pred_fallthru
          _
      $region12: #{tpu_custom_call.1} parent=5 // pred_fallthru
        _
      %p226 = scmp.lt.s32.totalorder %s17, 2
      // Predicated region
      $region29: #{tpu_custom_call.1} parent=5 // pred_check
        %p227 = pneg %p226
      $region30: #{tpu_custom_call.1} parent=5 // pred_check_branch
        %229 = sbr.rel (%p227) target = $region32
      $region31: #{tpu_custom_call.1} parent=5 // pred_region
        // Predicated region
        $region33: #{tpu_custom_call.1} parent=31 // pred_check
          %p230 = pneg %p49
        $region34: #{tpu_custom_call.1} parent=31 // pred_check_branch
          %232 = sbr.rel (%p230) target = $region36
        $region35: #{tpu_custom_call.1} parent=31 // pred_region
          %p233 = scmp.lt.s32.totalorder %s24, 1
          %s234 = scalar_select %p233, %s24, 1
          %s235 = smul.addr %s234, 12
          %s236 = smul.addr %s235, 8
          %s237 = scalar_lea.vmem %s0, %s236
        $region36: #{tpu_custom_call.1} parent=31 // pred_fallthru
          _
      $region32: #{tpu_custom_call.1} parent=5 // pred_fallthru
        _
      %p238 = scmp.le.s32.totalorder 1, %s17
      %p239 = scmp.lt.s32.totalorder %s17, 3
      %p240 = pnand %p238, %p239
      %p241 = pneg %p240
      // Predicated region
      $region37: #{tpu_custom_call.1} parent=5 // pred_check
        _
      $region38: #{tpu_custom_call.1} parent=5 // pred_check_branch
        %243 = sbr.rel (%p240) target = $region40
      $region39: #{tpu_custom_call.1} parent=5 // pred_region
        %s244 = ssub.s32 %s17, 1
        // Predicated region
        $region41: #{tpu_custom_call.1} parent=39 // pred_check
          %p245 = pneg %p76
        $region42: #{tpu_custom_call.1} parent=39 // pred_check_branch
          %247 = sbr.rel (%p245) target = $region44
        $region43: #{tpu_custom_call.1} parent=39 // pred_region
          %248 = dma.done [#allocation4], 16
        $region44: #{tpu_custom_call.1} parent=39 // pred_fallthru
          _
        // Predicated region
        $region45: #{tpu_custom_call.1} parent=39 // pred_check
          %p249 = pneg %p97
        $region46: #{tpu_custom_call.1} parent=39 // pred_check_branch
          %251 = sbr.rel (%p249) target = $region48
        $region47: #{tpu_custom_call.1} parent=39 // pred_region
          %252 = dma.done [#allocation6], 16
        $region48: #{tpu_custom_call.1} parent=39 // pred_fallthru
          _
        // Predicated region
        $region49: #{tpu_custom_call.1} parent=39 // pred_check
          %p253 = pneg %p118
        $region50: #{tpu_custom_call.1} parent=39 // pred_check_branch
          %255 = sbr.rel (%p253) target = $region52
        $region51: #{tpu_custom_call.1} parent=39 // pred_region
          %256 = dma.done [#allocation6], 16
        $region52: #{tpu_custom_call.1} parent=39 // pred_fallthru
          _
        // Predicated region
        $region53: #{tpu_custom_call.1} parent=39 // pred_check
          %p257 = pneg %p139
        $region54: #{tpu_custom_call.1} parent=39 // pred_check_branch
          %259 = sbr.rel (%p257) target = $region56
        $region55: #{tpu_custom_call.1} parent=39 // pred_region
          %260 = dma.done [#allocation9], 16
        $region56: #{tpu_custom_call.1} parent=39 // pred_fallthru
          _
        %261 = sfence
        %p262 = scmp.lt.s32.totalorder %s26, 1
        %s263 = scalar_select %p262, %s26, 1
        %s264 = smul.addr %s263, 12
        %s265 = smul.addr %s264, 8
        %s266 = scalar_lea.vmem %s0, %s265
        %p267 = pneg %p55
        %p268 = pneg %p52
        %p269 = pneg %p76
        %p270 = pneg %p73
        %p271 = pneg %p97
        %p272 = pneg %p94
        %p273 = pneg %p118
        %p274 = pneg %p115
        %p275 = pneg %p139
        %p276 = pneg %p136
        %p277 = pneg %p167
        %p278 = pneg %p164
        %s279 = sand.u32 %s154, 1
        %s280 = scalar_lea.sflag [#allocation3], %s279
        %s281 = sand.u32 %s154, 1
        %s282 = smul.addr %s281, 128
        %s283 = scalar_lea.vmem [#allocation10], %s282
        %p284 = scmp.lt.s32.totalorder %s26, 1
        %s285 = scalar_select %p284, %s26, 1
        %s286 = smul.addr %s285, 12
        %s287 = smul.addr %s286, 8
        %s288 = scalar_lea.vmem %s0, %s287
        %s289 = smul.u32 2, %s27
        %s290 = smul.u32 %s27, 16
        %s291 = scalar_lea.vmem %s288, %s290
        %v292 = vld [vmem:[%s291] sm:$0xff]
        %v293 = vld [vmem:[%s291 + $0x8] sm:$0xff]
        %v294 = vld [vmem:[%s291 + $0x10] sm:$0x3]
        %s295 = sld [smem:[#allocation2]]
        %v296 = vstv %s295
        %v297 = vmul.f32 %v292, %v296
        %v298 = vmul.f32 %v293, %v296
        %s299 = sld [smem:[#allocation2 + $0x1]]
        %v300 = vstv %s299
        %v301 = vmul.f32 %v292, %v300
        %v302 = vmul.f32 %v293, %v300
        %305 = vrot.lane.b32.xlu0 %v301, 127
        %v306 = vpop.permute.xlu0 %305
        %307 = vrot.lane.b32.xlu0 %v302, 127
        %v308 = vpop.permute.xlu0 %307
        %v311 = vadd.f32 %v297, %v306
        %v312 = vadd.f32 %v298, %v308
        %s313 = sld [smem:[#allocation2 + $0x2]]
        %v314 = vstv %s313
        %v315 = vmul.f32 %v292, %v314
        %v316 = vmul.f32 %v293, %v314
        %319 = vrot.lane.b32.xlu0 %v315, 126
        %v320 = vpop.permute.xlu0 %319
        %321 = vrot.lane.b32.xlu0 %v316, 126
        %v322 = vpop.permute.xlu0 %321
        %v325 = vadd.f32 %v311, %v320
        %v326 = vadd.f32 %v312, %v322
        %s327 = sld [smem:[#allocation2 + $0x3]]
        %v328 = vstv %s327
        %v329 = vmul.f32 %v292, %v328
        %v330 = vmul.f32 %v293, %v328
        %v331 = vmul.f32 %v294, %v328
        %vm335 = vcmask 1046528
        %v336 = vrot.slane %v329, 1
        %v337 = vrot.slane %v330, 1
        %v338 = vsel %vm335, %v336, %v337
        %v339 = vrot.slane %v331, 1
        %v340 = vsel %vm335, %v337, %v339
        %v343 = vadd.f32 %v325, %v338
        %v344 = vadd.f32 %v326, %v340
        %s345 = sld [smem:[#allocation2 + $0x4]]
        %v346 = vstv %s345
        %v347 = vmul.f32 %v292, %v346
        %v348 = vmul.f32 %v293, %v346
        %v349 = vmul.f32 %v294, %v346
        %v353 = vrot.slane %v347, 1
        %v354 = vrot.slane %v348, 1
        %v355 = vsel %vm335, %v353, %v354
        %v356 = vrot.slane %v349, 1
        %v357 = vsel %vm335, %v354, %v356
        %358 = vrot.lane.b32.xlu0 %v355, 127
        %v359 = vpop.permute.xlu0 %358
        %360 = vrot.lane.b32.xlu0 %v357, 127
        %v361 = vpop.permute.xlu0 %360
        %v364 = vadd.f32 %v343, %v359
        %v365 = vadd.f32 %v344, %v361
        %s366 = sld [smem:[#allocation2 + $0x5]]
        %v367 = vstv %s366
        %v368 = vmul.f32 %v292, %v367
        %v369 = vmul.f32 %v293, %v367
        %v370 = vmul.f32 %v294, %v367
        %v374 = vrot.slane %v368, 1
        %v375 = vrot.slane %v369, 1
        %v376 = vsel %vm335, %v374, %v375
        %v377 = vrot.slane %v370, 1
        %v378 = vsel %vm335, %v375, %v377
        %379 = vrot.lane.b32.xlu0 %v376, 126
        %v380 = vpop.permute.xlu0 %379
        %381 = vrot.lane.b32.xlu0 %v378, 126
        %v382 = vpop.permute.xlu0 %381
        %v385 = vadd.f32 %v364, %v380
        %v386 = vadd.f32 %v365, %v382
        %s387 = sld [smem:[#allocation2 + $0x6]]
        %v388 = vstv %s387
        %v389 = vmul.f32 %v292, %v388
        %v390 = vmul.f32 %v293, %v388
        %v391 = vmul.f32 %v294, %v388
        %vm395 = vcmask 1045504
        %v396 = vrot.slane %v389, 2
        %v397 = vrot.slane %v390, 2
        %v398 = vsel %vm395, %v396, %v397
        %v399 = vrot.slane %v391, 2
        %v400 = vsel %vm395, %v397, %v399
        %v403 = vadd.f32 %v385, %v398
        %v404 = vadd.f32 %v386, %v400
        %s405 = sld [smem:[#allocation2 + $0x7]]
        %v406 = vstv %s405
        %v407 = vmul.f32 %v292, %v406
        %v408 = vmul.f32 %v293, %v406
        %v409 = vmul.f32 %v294, %v406
        %v413 = vrot.slane %v407, 2
        %v414 = vrot.slane %v408, 2
        %v415 = vsel %vm395, %v413, %v414
        %v416 = vrot.slane %v409, 2
        %v417 = vsel %vm395, %v414, %v416
        %418 = vrot.lane.b32.xlu0 %v415, 127
        %v419 = vpop.permute.xlu0 %418
        %420 = vrot.lane.b32.xlu0 %v417, 127
        %v421 = vpop.permute.xlu0 %420
        %v424 = vadd.f32 %v403, %v419
        %v425 = vadd.f32 %v404, %v421
        %s426 = sld [smem:[#allocation2 + $0x8]]
        %v427 = vstv %s426
        %v428 = vmul.f32 %v292, %v427
        %v429 = vmul.f32 %v293, %v427
        %v430 = vmul.f32 %v294, %v427
        %v434 = vrot.slane %v428, 2
        %v435 = vrot.slane %v429, 2
        %v436 = vsel %vm395, %v434, %v435
        %v437 = vrot.slane %v430, 2
        %v438 = vsel %vm395, %v435, %v437
        %439 = vrot.lane.b32.xlu0 %v436, 126
        %v440 = vpop.permute.xlu0 %439
        %441 = vrot.lane.b32.xlu0 %v438, 126
        %v442 = vpop.permute.xlu0 %441
        %v445 = vadd.f32 %v424, %v440
        %v446 = vadd.f32 %v425, %v442
        %s447 = sld [smem:[#allocation5]]
        %v448 = vstv %s447
        %v449 = vadd.f32 %v445, %v448
        %v450 = vadd.f32 %v446, %v448
        %v451 = vmax.f32 %v449, 0.0
        %v452 = vmax.f32 %v450, 0.0
        %s453 = sld [smem:[#allocation7]]
        %v454 = vstv %s453
        %v455 = vmul.f32 %v451, %v454
        %v456 = vmul.f32 %v452, %v454
        %s457 = sld [smem:[#allocation7 + $0x4]]
        %v458 = vstv %s457
        %v459 = vmul.f32 %v451, %v458
        %v460 = vmul.f32 %v452, %v458
        %s461 = sld [smem:[#allocation7 + $0x8]]
        %v462 = vstv %s461
        %v463 = vmul.f32 %v451, %v462
        %v464 = vmul.f32 %v452, %v462
        %s465 = sld [smem:[#allocation7 + $0xc]]
        %v466 = vstv %s465
        %v467 = vmul.f32 %v451, %v466
        %v468 = vmul.f32 %v452, %v466
        %s469 = sld [smem:[#allocation7 + $0x10]]
        %v470 = vstv %s469
        %v471 = vmul.f32 %v451, %v470
        %v472 = vmul.f32 %v452, %v470
        %s473 = sld [smem:[#allocation7 + $0x14]]
        %v474 = vstv %s473
        %v475 = vmul.f32 %v451, %v474
        %v476 = vmul.f32 %v452, %v474
        %s477 = sld [smem:[#allocation7 + $0x18]]
        %v478 = vstv %s477
        %v479 = vmul.f32 %v451, %v478
        %v480 = vmul.f32 %v452, %v478
        %s481 = sld [smem:[#allocation7 + $0x1c]]
        %v482 = vstv %s481
        %v483 = vmul.f32 %v451, %v482
        %v484 = vmul.f32 %v452, %v482
        %s485 = sadd.s32 %s290, 24
        %s486 = scalar_lea.vmem %s288, %s485
        %v487 = vld [vmem:[%s486] sm:$0xff]
        %v488 = vld [vmem:[%s486 + $0x8] sm:$0xff]
        %v489 = vld [vmem:[%s486 + $0x10] sm:$0x3]
        %s490 = sld [smem:[#allocation2 + $0x9]]
        %v491 = vstv %s490
        %v492 = vmul.f32 %v487, %v491
        %v493 = vmul.f32 %v488, %v491
        %s494 = sld [smem:[#allocation2 + $0xa]]
        %v495 = vstv %s494
        %v496 = vmul.f32 %v487, %v495
        %v497 = vmul.f32 %v488, %v495
        %500 = vrot.lane.b32.xlu0 %v496, 127
        %v501 = vpop.permute.xlu0 %500
        %502 = vrot.lane.b32.xlu0 %v497, 127
        %v503 = vpop.permute.xlu0 %502
        %v506 = vadd.f32 %v492, %v501
        %v507 = vadd.f32 %v493, %v503
        %s508 = sld [smem:[#allocation2 + $0xb]]
        %v509 = vstv %s508
        %v510 = vmul.f32 %v487, %v509
        %v511 = vmul.f32 %v488, %v509
        %514 = vrot.lane.b32.xlu0 %v510, 126
        %v515 = vpop.permute.xlu0 %514
        %516 = vrot.lane.b32.xlu0 %v511, 126
        %v517 = vpop.permute.xlu0 %516
        %v520 = vadd.f32 %v506, %v515
        %v521 = vadd.f32 %v507, %v517
        %s522 = sld [smem:[#allocation2 + $0xc]]
        %v523 = vstv %s522
        %v524 = vmul.f32 %v487, %v523
        %v525 = vmul.f32 %v488, %v523
        %v526 = vmul.f32 %v489, %v523
        %v530 = vrot.slane %v524, 1
        %v531 = vrot.slane %v525, 1
        %v532 = vsel %vm335, %v530, %v531
        %v533 = vrot.slane %v526, 1
        %v534 = vsel %vm335, %v531, %v533
        %v537 = vadd.f32 %v520, %v532
        %v538 = vadd.f32 %v521, %v534
        %s539 = sld [smem:[#allocation2 + $0xd]]
        %v540 = vstv %s539
        %v541 = vmul.f32 %v487, %v540
        %v542 = vmul.f32 %v488, %v540
        %v543 = vmul.f32 %v489, %v540
        %v547 = vrot.slane %v541, 1
        %v548 = vrot.slane %v542, 1
        %v549 = vsel %vm335, %v547, %v548
        %v550 = vrot.slane %v543, 1
        %v551 = vsel %vm335, %v548, %v550
        %552 = vrot.lane.b32.xlu0 %v549, 127
        %v553 = vpop.permute.xlu0 %552
        %554 = vrot.lane.b32.xlu0 %v551, 127
        %v555 = vpop.permute.xlu0 %554
        %v558 = vadd.f32 %v537, %v553
        %v559 = vadd.f32 %v538, %v555
        %s560 = sld [smem:[#allocation2 + $0xe]]
        %v561 = vstv %s560
        %v562 = vmul.f32 %v487, %v561
        %v563 = vmul.f32 %v488, %v561
        %v564 = vmul.f32 %v489, %v561
        %v568 = vrot.slane %v562, 1
        %v569 = vrot.slane %v563, 1
        %v570 = vsel %vm335, %v568, %v569
        %v571 = vrot.slane %v564, 1
        %v572 = vsel %vm335, %v569, %v571
        %573 = vrot.lane.b32.xlu0 %v570, 126
        %v574 = vpop.permute.xlu0 %573
        %575 = vrot.lane.b32.xlu0 %v572, 126
        %v576 = vpop.permute.xlu0 %575
        %v579 = vadd.f32 %v558, %v574
        %v580 = vadd.f32 %v559, %v576
        %s581 = sld [smem:[#allocation2 + $0xf]]
        %v582 = vstv %s581
        %v583 = vmul.f32 %v487, %v582
        %v584 = vmul.f32 %v488, %v582
        %v585 = vmul.f32 %v489, %v582
        %v589 = vrot.slane %v583, 2
        %v590 = vrot.slane %v584, 2
        %v591 = vsel %vm395, %v589, %v590
        %v592 = vrot.slane %v585, 2
        %v593 = vsel %vm395, %v590, %v592
        %v596 = vadd.f32 %v579, %v591
        %v597 = vadd.f32 %v580, %v593
        %s598 = sld [smem:[#allocation2 + $0x10]]
        %v599 = vstv %s598
        %v600 = vmul.f32 %v487, %v599
        %v601 = vmul.f32 %v488, %v599
        %v602 = vmul.f32 %v489, %v599
        %v606 = vrot.slane %v600, 2
        %v607 = vrot.slane %v601, 2
        %v608 = vsel %vm395, %v606, %v607
        %v609 = vrot.slane %v602, 2
        %v610 = vsel %vm395, %v607, %v609
        %611 = vrot.lane.b32.xlu0 %v608, 127
        %v612 = vpop.permute.xlu0 %611
        %613 = vrot.lane.b32.xlu0 %v610, 127
        %v614 = vpop.permute.xlu0 %613
        %v617 = vadd.f32 %v596, %v612
        %v618 = vadd.f32 %v597, %v614
        %s619 = sld [smem:[#allocation2 + $0x11]]
        %v620 = vstv %s619
        %v621 = vmul.f32 %v487, %v620
        %v622 = vmul.f32 %v488, %v620
        %v623 = vmul.f32 %v489, %v620
        %v627 = vrot.slane %v621, 2
        %v628 = vrot.slane %v622, 2
        %v629 = vsel %vm395, %v627, %v628
        %v630 = vrot.slane %v623, 2
        %v631 = vsel %vm395, %v628, %v630
        %632 = vrot.lane.b32.xlu0 %v629, 126
        %v633 = vpop.permute.xlu0 %632
        %634 = vrot.lane.b32.xlu0 %v631, 126
        %v635 = vpop.permute.xlu0 %634
        %v638 = vadd.f32 %v617, %v633
        %v639 = vadd.f32 %v618, %v635
        %s640 = sld [smem:[#allocation5 + $0x1]]
        %v641 = vstv %s640
        %v642 = vadd.f32 %v638, %v641
        %v643 = vadd.f32 %v639, %v641
        %v644 = vmax.f32 %v642, 0.0
        %v645 = vmax.f32 %v643, 0.0
        %s646 = sld [smem:[#allocation7 + $0x1]]
        %v647 = vstv %s646
        %v648 = vmul.f32 %v644, %v647
        %v649 = vmul.f32 %v645, %v647
        %v650 = vadd.f32 %v455, %v648
        %v651 = vadd.f32 %v456, %v649
        %s652 = sld [smem:[#allocation7 + $0x5]]
        %v653 = vstv %s652
        %v654 = vmul.f32 %v644, %v653
        %v655 = vmul.f32 %v645, %v653
        %v656 = vadd.f32 %v459, %v654
        %v657 = vadd.f32 %v460, %v655
        %s658 = sld [smem:[#allocation7 + $0x9]]
        %v659 = vstv %s658
        %v660 = vmul.f32 %v644, %v659
        %v661 = vmul.f32 %v645, %v659
        %v662 = vadd.f32 %v463, %v660
        %v663 = vadd.f32 %v464, %v661
        %s664 = sld [smem:[#allocation7 + $0xd]]
        %v665 = vstv %s664
        %v666 = vmul.f32 %v644, %v665
        %v667 = vmul.f32 %v645, %v665
        %v668 = vadd.f32 %v467, %v666
        %v669 = vadd.f32 %v468, %v667
        %s670 = sld [smem:[#allocation7 + $0x11]]
        %v671 = vstv %s670
        %v672 = vmul.f32 %v644, %v671
        %v673 = vmul.f32 %v645, %v671
        %v674 = vadd.f32 %v471, %v672
        %v675 = vadd.f32 %v472, %v673
        %s676 = sld [smem:[#allocation7 + $0x15]]
        %v677 = vstv %s676
        %v678 = vmul.f32 %v644, %v677
        %v679 = vmul.f32 %v645, %v677
        %v680 = vadd.f32 %v475, %v678
        %v681 = vadd.f32 %v476, %v679
        %s682 = sld [smem:[#allocation7 + $0x19]]
        %v683 = vstv %s682
        %v684 = vmul.f32 %v644, %v683
        %v685 = vmul.f32 %v645, %v683
        %v686 = vadd.f32 %v479, %v684
        %v687 = vadd.f32 %v480, %v685
        %s688 = sld [smem:[#allocation7 + $0x1d]]
        %v689 = vstv %s688
        %v690 = vmul.f32 %v644, %v689
        %v691 = vmul.f32 %v645, %v689
        %v692 = vadd.f32 %v483, %v690
        %v693 = vadd.f32 %v484, %v691
        %s694 = sadd.s32 %s290, 48
        %s695 = scalar_lea.vmem %s288, %s694
        %v696 = vld [vmem:[%s695] sm:$0xff]
        %v697 = vld [vmem:[%s695 + $0x8] sm:$0xff]
        %v698 = vld [vmem:[%s695 + $0x10] sm:$0x3]
        %s699 = sld [smem:[#allocation2 + $0x12]]
        %v700 = vstv %s699
        %v701 = vmul.f32 %v696, %v700
        %v702 = vmul.f32 %v697, %v700
        %s703 = sld [smem:[#allocation2 + $0x13]]
        %v704 = vstv %s703
        %v705 = vmul.f32 %v696, %v704
        %v706 = vmul.f32 %v697, %v704
        %709 = vrot.lane.b32.xlu0 %v705, 127
        %v710 = vpop.permute.xlu0 %709
        %711 = vrot.lane.b32.xlu0 %v706, 127
        %v712 = vpop.permute.xlu0 %711
        %v715 = vadd.f32 %v701, %v710
        %v716 = vadd.f32 %v702, %v712
        %s717 = sld [smem:[#allocation2 + $0x14]]
        %v718 = vstv %s717
        %v719 = vmul.f32 %v696, %v718
        %v720 = vmul.f32 %v697, %v718
        %723 = vrot.lane.b32.xlu0 %v719, 126
        %v724 = vpop.permute.xlu0 %723
        %725 = vrot.lane.b32.xlu0 %v720, 126
        %v726 = vpop.permute.xlu0 %725
        %v729 = vadd.f32 %v715, %v724
        %v730 = vadd.f32 %v716, %v726
        %s731 = sld [smem:[#allocation2 + $0x15]]
        %v732 = vstv %s731
        %v733 = vmul.f32 %v696, %v732
        %v734 = vmul.f32 %v697, %v732
        %v735 = vmul.f32 %v698, %v732
        %v739 = vrot.slane %v733, 1
        %v740 = vrot.slane %v734, 1
        %v741 = vsel %vm335, %v739, %v740
        %v742 = vrot.slane %v735, 1
        %v743 = vsel %vm335, %v740, %v742
        %v746 = vadd.f32 %v729, %v741
        %v747 = vadd.f32 %v730, %v743
        %s748 = sld [smem:[#allocation2 + $0x16]]
        %v749 = vstv %s748
        %v750 = vmul.f32 %v696, %v749
        %v751 = vmul.f32 %v697, %v749
        %v752 = vmul.f32 %v698, %v749
        %v756 = vrot.slane %v750, 1
        %v757 = vrot.slane %v751, 1
        %v758 = vsel %vm335, %v756, %v757
        %v759 = vrot.slane %v752, 1
        %v760 = vsel %vm335, %v757, %v759
        %761 = vrot.lane.b32.xlu0 %v758, 127
        %v762 = vpop.permute.xlu0 %761
        %763 = vrot.lane.b32.xlu0 %v760, 127
        %v764 = vpop.permute.xlu0 %763
        %v767 = vadd.f32 %v746, %v762
        %v768 = vadd.f32 %v747, %v764
        %s769 = sld [smem:[#allocation2 + $0x17]]
        %v770 = vstv %s769
        %v771 = vmul.f32 %v696, %v770
        %v772 = vmul.f32 %v697, %v770
        %v773 = vmul.f32 %v698, %v770
        %v777 = vrot.slane %v771, 1
        %v778 = vrot.slane %v772, 1
        %v779 = vsel %vm335, %v777, %v778
        %v780 = vrot.slane %v773, 1
        %v781 = vsel %vm335, %v778, %v780
        %782 = vrot.lane.b32.xlu0 %v779, 126
        %v783 = vpop.permute.xlu0 %782
        %784 = vrot.lane.b32.xlu0 %v781, 126
        %v785 = vpop.permute.xlu0 %784
        %v788 = vadd.f32 %v767, %v783
        %v789 = vadd.f32 %v768, %v785
        %s790 = sld [smem:[#allocation2 + $0x18]]
        %v791 = vstv %s790
        %v792 = vmul.f32 %v696, %v791
        %v793 = vmul.f32 %v697, %v791
        %v794 = vmul.f32 %v698, %v791
        %v798 = vrot.slane %v792, 2
        %v799 = vrot.slane %v793, 2
        %v800 = vsel %vm395, %v798, %v799
        %v801 = vrot.slane %v794, 2
        %v802 = vsel %vm395, %v799, %v801
        %v805 = vadd.f32 %v788, %v800
        %v806 = vadd.f32 %v789, %v802
        %s807 = sld [smem:[#allocation2 + $0x19]]
        %v808 = vstv %s807
        %v809 = vmul.f32 %v696, %v808
        %v810 = vmul.f32 %v697, %v808
        %v811 = vmul.f32 %v698, %v808
        %v815 = vrot.slane %v809, 2
        %v816 = vrot.slane %v810, 2
        %v817 = vsel %vm395, %v815, %v816
        %v818 = vrot.slane %v811, 2
        %v819 = vsel %vm395, %v816, %v818
        %820 = vrot.lane.b32.xlu0 %v817, 127
        %v821 = vpop.permute.xlu0 %820
        %822 = vrot.lane.b32.xlu0 %v819, 127
        %v823 = vpop.permute.xlu0 %822
        %v826 = vadd.f32 %v805, %v821
        %v827 = vadd.f32 %v806, %v823
        %s828 = sld [smem:[#allocation2 + $0x1a]]
        %v829 = vstv %s828
        %v830 = vmul.f32 %v696, %v829
        %v831 = vmul.f32 %v697, %v829
        %v832 = vmul.f32 %v698, %v829
        %v836 = vrot.slane %v830, 2
        %v837 = vrot.slane %v831, 2
        %v838 = vsel %vm395, %v836, %v837
        %v839 = vrot.slane %v832, 2
        %v840 = vsel %vm395, %v837, %v839
        %841 = vrot.lane.b32.xlu0 %v838, 126
        %v842 = vpop.permute.xlu0 %841
        %843 = vrot.lane.b32.xlu0 %v840, 126
        %v844 = vpop.permute.xlu0 %843
        %v847 = vadd.f32 %v826, %v842
        %v848 = vadd.f32 %v827, %v844
        %s849 = sld [smem:[#allocation5 + $0x2]]
        %v850 = vstv %s849
        %v851 = vadd.f32 %v847, %v850
        %v852 = vadd.f32 %v848, %v850
        %v853 = vmax.f32 %v851, 0.0
        %v854 = vmax.f32 %v852, 0.0
        %s855 = sld [smem:[#allocation7 + $0x2]]
        %v856 = vstv %s855
        %v857 = vmul.f32 %v853, %v856
        %v858 = vmul.f32 %v854, %v856
        %v859 = vadd.f32 %v650, %v857
        %v860 = vadd.f32 %v651, %v858
        %s861 = sld [smem:[#allocation7 + $0x6]]
        %v862 = vstv %s861
        %v863 = vmul.f32 %v853, %v862
        %v864 = vmul.f32 %v854, %v862
        %v865 = vadd.f32 %v656, %v863
        %v866 = vadd.f32 %v657, %v864
        %s867 = sld [smem:[#allocation7 + $0xa]]
        %v868 = vstv %s867
        %v869 = vmul.f32 %v853, %v868
        %v870 = vmul.f32 %v854, %v868
        %v871 = vadd.f32 %v662, %v869
        %v872 = vadd.f32 %v663, %v870
        %s873 = sld [smem:[#allocation7 + $0xe]]
        %v874 = vstv %s873
        %v875 = vmul.f32 %v853, %v874
        %v876 = vmul.f32 %v854, %v874
        %v877 = vadd.f32 %v668, %v875
        %v878 = vadd.f32 %v669, %v876
        %s879 = sld [smem:[#allocation7 + $0x12]]
        %v880 = vstv %s879
        %v881 = vmul.f32 %v853, %v880
        %v882 = vmul.f32 %v854, %v880
        %v883 = vadd.f32 %v674, %v881
        %v884 = vadd.f32 %v675, %v882
        %s885 = sld [smem:[#allocation7 + $0x16]]
        %v886 = vstv %s885
        %v887 = vmul.f32 %v853, %v886
        %v888 = vmul.f32 %v854, %v886
        %v889 = vadd.f32 %v680, %v887
        %v890 = vadd.f32 %v681, %v888
        %s891 = sld [smem:[#allocation7 + $0x1a]]
        %v892 = vstv %s891
        %v893 = vmul.f32 %v853, %v892
        %v894 = vmul.f32 %v854, %v892
        %v895 = vadd.f32 %v686, %v893
        %v896 = vadd.f32 %v687, %v894
        %s897 = sld [smem:[#allocation7 + $0x1e]]
        %v898 = vstv %s897
        %v899 = vmul.f32 %v853, %v898
        %v900 = vmul.f32 %v854, %v898
        %v901 = vadd.f32 %v692, %v899
        %v902 = vadd.f32 %v693, %v900
        %s903 = sadd.s32 %s290, 72
        %s904 = scalar_lea.vmem %s288, %s903
        %v905 = vld [vmem:[%s904] sm:$0xff]
        %v906 = vld [vmem:[%s904 + $0x8] sm:$0xff]
        %v907 = vld [vmem:[%s904 + $0x10] sm:$0x3]
        %s908 = sld [smem:[#allocation2 + $0x1b]]
        %v909 = vstv %s908
        %v910 = vmul.f32 %v905, %v909
        %v911 = vmul.f32 %v906, %v909
        %s912 = sld [smem:[#allocation2 + $0x1c]]
        %v913 = vstv %s912
        %v914 = vmul.f32 %v905, %v913
        %v915 = vmul.f32 %v906, %v913
        %918 = vrot.lane.b32.xlu0 %v914, 127
        %v919 = vpop.permute.xlu0 %918
        %920 = vrot.lane.b32.xlu0 %v915, 127
        %v921 = vpop.permute.xlu0 %920
        %v924 = vadd.f32 %v910, %v919
        %v925 = vadd.f32 %v911, %v921
        %s926 = sld [smem:[#allocation2 + $0x1d]]
        %v927 = vstv %s926
        %v928 = vmul.f32 %v905, %v927
        %v929 = vmul.f32 %v906, %v927
        %932 = vrot.lane.b32.xlu0 %v928, 126
        %v933 = vpop.permute.xlu0 %932
        %934 = vrot.lane.b32.xlu0 %v929, 126
        %v935 = vpop.permute.xlu0 %934
        %v938 = vadd.f32 %v924, %v933
        %v939 = vadd.f32 %v925, %v935
        %s940 = sld [smem:[#allocation2 + $0x1e]]
        %v941 = vstv %s940
        %v942 = vmul.f32 %v905, %v941
        %v943 = vmul.f32 %v906, %v941
        %v944 = vmul.f32 %v907, %v941
        %v948 = vrot.slane %v942, 1
        %v949 = vrot.slane %v943, 1
        %v950 = vsel %vm335, %v948, %v949
        %v951 = vrot.slane %v944, 1
        %v952 = vsel %vm335, %v949, %v951
        %v955 = vadd.f32 %v938, %v950
        %v956 = vadd.f32 %v939, %v952
        %s957 = sld [smem:[#allocation2 + $0x1f]]
        %v958 = vstv %s957
        %v959 = vmul.f32 %v905, %v958
        %v960 = vmul.f32 %v906, %v958
        %v961 = vmul.f32 %v907, %v958
        %v965 = vrot.slane %v959, 1
        %v966 = vrot.slane %v960, 1
        %v967 = vsel %vm335, %v965, %v966
        %v968 = vrot.slane %v961, 1
        %v969 = vsel %vm335, %v966, %v968
        %970 = vrot.lane.b32.xlu0 %v967, 127
        %v971 = vpop.permute.xlu0 %970
        %972 = vrot.lane.b32.xlu0 %v969, 127
        %v973 = vpop.permute.xlu0 %972
        %v976 = vadd.f32 %v955, %v971
        %v977 = vadd.f32 %v956, %v973
        %s978 = sld [smem:[#allocation2 + $0x20]]
        %v979 = vstv %s978
        %v980 = vmul.f32 %v905, %v979
        %v981 = vmul.f32 %v906, %v979
        %v982 = vmul.f32 %v907, %v979
        %v986 = vrot.slane %v980, 1
        %v987 = vrot.slane %v981, 1
        %v988 = vsel %vm335, %v986, %v987
        %v989 = vrot.slane %v982, 1
        %v990 = vsel %vm335, %v987, %v989
        %991 = vrot.lane.b32.xlu0 %v988, 126
        %v992 = vpop.permute.xlu0 %991
        %993 = vrot.lane.b32.xlu0 %v990, 126
        %v994 = vpop.permute.xlu0 %993
        %v997 = vadd.f32 %v976, %v992
        %v998 = vadd.f32 %v977, %v994
        %s999 = sld [smem:[#allocation2 + $0x21]]
        %v1000 = vstv %s999
        %v1001 = vmul.f32 %v905, %v1000
        %v1002 = vmul.f32 %v906, %v1000
        %v1003 = vmul.f32 %v907, %v1000
        %v1007 = vrot.slane %v1001, 2
        %v1008 = vrot.slane %v1002, 2
        %v1009 = vsel %vm395, %v1007, %v1008
        %v1010 = vrot.slane %v1003, 2
        %v1011 = vsel %vm395, %v1008, %v1010
        %v1014 = vadd.f32 %v997, %v1009
        %v1015 = vadd.f32 %v998, %v1011
        %s1016 = sld [smem:[#allocation2 + $0x22]]
        %v1017 = vstv %s1016
        %v1018 = vmul.f32 %v905, %v1017
        %v1019 = vmul.f32 %v906, %v1017
        %v1020 = vmul.f32 %v907, %v1017
        %v1024 = vrot.slane %v1018, 2
        %v1025 = vrot.slane %v1019, 2
        %v1026 = vsel %vm395, %v1024, %v1025
        %v1027 = vrot.slane %v1020, 2
        %v1028 = vsel %vm395, %v1025, %v1027
        %1029 = vrot.lane.b32.xlu0 %v1026, 127
        %v1030 = vpop.permute.xlu0 %1029
        %1031 = vrot.lane.b32.xlu0 %v1028, 127
        %v1032 = vpop.permute.xlu0 %1031
        %v1035 = vadd.f32 %v1014, %v1030
        %v1036 = vadd.f32 %v1015, %v1032
        %s1037 = sld [smem:[#allocation2 + $0x23]]
        %v1038 = vstv %s1037
        %v1039 = vmul.f32 %v905, %v1038
        %v1040 = vmul.f32 %v906, %v1038
        %v1041 = vmul.f32 %v907, %v1038
        %v1045 = vrot.slane %v1039, 2
        %v1046 = vrot.slane %v1040, 2
        %v1047 = vsel %vm395, %v1045, %v1046
        %v1048 = vrot.slane %v1041, 2
        %v1049 = vsel %vm395, %v1046, %v1048
        %1050 = vrot.lane.b32.xlu0 %v1047, 126
        %v1051 = vpop.permute.xlu0 %1050
        %1052 = vrot.lane.b32.xlu0 %v1049, 126
        %v1053 = vpop.permute.xlu0 %1052
        %v1056 = vadd.f32 %v1035, %v1051
        %v1057 = vadd.f32 %v1036, %v1053
        %s1058 = sld [smem:[#allocation5 + $0x3]]
        %v1059 = vstv %s1058
        %v1060 = vadd.f32 %v1056, %v1059
        %v1061 = vadd.f32 %v1057, %v1059
        %v1062 = vmax.f32 %v1060, 0.0
        %v1063 = vmax.f32 %v1061, 0.0
        %s1064 = sld [smem:[#allocation7 + $0x3]]
        %v1065 = vstv %s1064
        %v1066 = vmul.f32 %v1062, %v1065
        %v1067 = vmul.f32 %v1063, %v1065
        %v1068 = vadd.f32 %v859, %v1066
        %v1069 = vadd.f32 %v860, %v1067
        %s1070 = sld [smem:[#allocation7 + $0x7]]
        %v1071 = vstv %s1070
        %v1072 = vmul.f32 %v1062, %v1071
        %v1073 = vmul.f32 %v1063, %v1071
        %v1074 = vadd.f32 %v865, %v1072
        %v1075 = vadd.f32 %v866, %v1073
        %s1076 = sld [smem:[#allocation7 + $0xb]]
        %v1077 = vstv %s1076
        %v1078 = vmul.f32 %v1062, %v1077
        %v1079 = vmul.f32 %v1063, %v1077
        %v1080 = vadd.f32 %v871, %v1078
        %v1081 = vadd.f32 %v872, %v1079
        %s1082 = sld [smem:[#allocation7 + $0xf]]
        %v1083 = vstv %s1082
        %v1084 = vmul.f32 %v1062, %v1083
        %v1085 = vmul.f32 %v1063, %v1083
        %v1086 = vadd.f32 %v877, %v1084
        %v1087 = vadd.f32 %v878, %v1085
        %s1088 = sld [smem:[#allocation7 + $0x13]]
        %v1089 = vstv %s1088
        %v1090 = vmul.f32 %v1062, %v1089
        %v1091 = vmul.f32 %v1063, %v1089
        %v1092 = vadd.f32 %v883, %v1090
        %v1093 = vadd.f32 %v884, %v1091
        %s1094 = sld [smem:[#allocation7 + $0x17]]
        %v1095 = vstv %s1094
        %v1096 = vmul.f32 %v1062, %v1095
        %v1097 = vmul.f32 %v1063, %v1095
        %v1098 = vadd.f32 %v889, %v1096
        %v1099 = vadd.f32 %v890, %v1097
        %s1100 = sld [smem:[#allocation7 + $0x1b]]
        %v1101 = vstv %s1100
        %v1102 = vmul.f32 %v1062, %v1101
        %v1103 = vmul.f32 %v1063, %v1101
        %v1104 = vadd.f32 %v895, %v1102
        %v1105 = vadd.f32 %v896, %v1103
        %s1106 = sld [smem:[#allocation7 + $0x1f]]
        %v1107 = vstv %s1106
        %v1108 = vmul.f32 %v1062, %v1107
        %v1109 = vmul.f32 %v1063, %v1107
        %v1110 = vadd.f32 %v901, %v1108
        %v1111 = vadd.f32 %v902, %v1109
        %s1112 = sld [smem:[#allocation8]]
        %v1113 = vstv %s1112
        %v1114 = vadd.f32 %v1068, %v1113
        %v1115 = vadd.f32 %v1069, %v1113
        %v1116 = vmax.f32 %v1114, 0.0
        %v1117 = vmax.f32 %v1115, 0.0
        %s1118 = sld [smem:[#allocation8 + $0x1]]
        %v1119 = vstv %s1118
        %v1120 = vadd.f32 %v1074, %v1119
        %v1121 = vadd.f32 %v1075, %v1119
        %v1122 = vmax.f32 %v1120, 0.0
        %v1123 = vmax.f32 %v1121, 0.0
        %s1124 = sld [smem:[#allocation8 + $0x2]]
        %v1125 = vstv %s1124
        %v1126 = vadd.f32 %v1080, %v1125
        %v1127 = vadd.f32 %v1081, %v1125
        %v1128 = vmax.f32 %v1126, 0.0
        %v1129 = vmax.f32 %v1127, 0.0
        %s1130 = sld [smem:[#allocation8 + $0x3]]
        %v1131 = vstv %s1130
        %v1132 = vadd.f32 %v1086, %v1131
        %v1133 = vadd.f32 %v1087, %v1131
        %v1134 = vmax.f32 %v1132, 0.0
        %v1135 = vmax.f32 %v1133, 0.0
        %s1136 = sld [smem:[#allocation8 + $0x4]]
        %v1137 = vstv %s1136
        %v1138 = vadd.f32 %v1092, %v1137
        %v1139 = vadd.f32 %v1093, %v1137
        %v1140 = vmax.f32 %v1138, 0.0
        %v1141 = vmax.f32 %v1139, 0.0
        %s1142 = sld [smem:[#allocation8 + $0x5]]
        %v1143 = vstv %s1142
        %v1144 = vadd.f32 %v1098, %v1143
        %v1145 = vadd.f32 %v1099, %v1143
        %v1146 = vmax.f32 %v1144, 0.0
        %v1147 = vmax.f32 %v1145, 0.0
        %s1148 = sld [smem:[#allocation8 + $0x6]]
        %v1149 = vstv %s1148
        %v1150 = vadd.f32 %v1104, %v1149
        %v1151 = vadd.f32 %v1105, %v1149
        %v1152 = vmax.f32 %v1150, 0.0
        %v1153 = vmax.f32 %v1151, 0.0
        %s1154 = sld [smem:[#allocation8 + $0x7]]
        %v1155 = vstv %s1154
        %v1156 = vadd.f32 %v1110, %v1155
        %v1157 = vadd.f32 %v1111, %v1155
        %v1158 = vmax.f32 %v1156, 0.0
        %v1159 = vmax.f32 %v1157, 0.0
        %vm1160 = vcmask 130048
        %1161 = vst.msk [vmem:[%s283] sm:$0xff] %vm1160, %v1116
        %1162 = vst.msk [vmem:[%s283 + $0x8] sm:$0xff] %vm1160, %v1117
        %1163 = vst.msk [vmem:[%s283 + $0x10] sm:$0xff] %vm1160, %v1122
        %1164 = vst.msk [vmem:[%s283 + $0x18] sm:$0xff] %vm1160, %v1123
        %1165 = vst.msk [vmem:[%s283 + $0x20] sm:$0xff] %vm1160, %v1128
        %1166 = vst.msk [vmem:[%s283 + $0x28] sm:$0xff] %vm1160, %v1129
        %1167 = vst.msk [vmem:[%s283 + $0x30] sm:$0xff] %vm1160, %v1134
        %1168 = vst.msk [vmem:[%s283 + $0x38] sm:$0xff] %vm1160, %v1135
        %1169 = vst.msk [vmem:[%s283 + $0x40] sm:$0xff] %vm1160, %v1140
        %1170 = vst.msk [vmem:[%s283 + $0x48] sm:$0xff] %vm1160, %v1141
        %1171 = vst.msk [vmem:[%s283 + $0x50] sm:$0xff] %vm1160, %v1146
        %1172 = vst.msk [vmem:[%s283 + $0x58] sm:$0xff] %vm1160, %v1147
        %1173 = vst.msk [vmem:[%s283 + $0x60] sm:$0xff] %vm1160, %v1152
        %1174 = vst.msk [vmem:[%s283 + $0x68] sm:$0xff] %vm1160, %v1153
        %1175 = vst.msk [vmem:[%s283 + $0x70] sm:$0xff] %vm1160, %v1158
        %1176 = vst.msk [vmem:[%s283 + $0x78] sm:$0xff] %vm1160, %v1159
        %s1177 = sand.u32 %s154, 1
        %s1178 = scalar_lea.sflag [#allocation3], %s1177
        %s1179 = sand.u32 %s154, 1
        %s1180 = smul.addr %s1179, 128
        %s1181 = scalar_lea.vmem [#allocation10], %s1180
        // Predicated region
        $region57: #{tpu_custom_call.1} parent=39 // pred_check
          %p1182 = pneg %p164
        $region58: #{tpu_custom_call.1} parent=39 // pred_check_branch
          %1184 = sbr.rel (%p1182) target = $region60
        $region59: #{tpu_custom_call.1} parent=39 // pred_region
          %s1185 = smul.u32 2, %s27
          %s1187 = ssub.s32 2048, 2048
          %1188 = vsyncadd %s1178, %s1187
          %s1189 = smul.addr %s26, 16
          %s1190 = sadd.s32 %s1185, %s1189
          %s1191 = smul.addr %s1190, 128
          %s1192 = scalar_lea.hbm %s5, %s1191
          %s1193 = sshll.u32 %s1181, 4
          %s1194 = int_to_ptr.vmem [resolvable:$true] %s1193
          %1199 = dma.vmem_to_hbm [thread:$0]  %s1194, 2048, %s1192, %s1178, 128, 128, 8
        $region60: #{tpu_custom_call.1} parent=39 // pred_fallthru
          _
      $region40: #{tpu_custom_call.1} parent=5 // pred_fallthru
        _
      %p1200 = scmp.le.s32.totalorder 2, %s17
      // Predicated region
      $region61: #{tpu_custom_call.1} parent=5 // pred_check
        %p1201 = pneg %p1200
      $region62: #{tpu_custom_call.1} parent=5 // pred_check_branch
        %1203 = sbr.rel (%p1201) target = $region64
      $region63: #{tpu_custom_call.1} parent=5 // pred_region
        %s1204 = ssub.s32 %s17, 2
        // Predicated region
        $region65: #{tpu_custom_call.1} parent=63 // pred_check
          %p1205 = pneg %p170
        $region66: #{tpu_custom_call.1} parent=63 // pred_check_branch
          %1207 = sbr.rel (%p1205) target = $region68
        $region67: #{tpu_custom_call.1} parent=63 // pred_region
          %s1208 = sand.u32 %s155, 1
          %s1209 = scalar_lea.sflag [#allocation3], %s1208
          %s1210 = sand.u32 %s155, 1
          %s1211 = smul.addr %s1210, 128
          %s1212 = scalar_lea.vmem [#allocation10], %s1211
          %1213 = dma.done %s1209, 2048
        $region68: #{tpu_custom_call.1} parent=63 // pred_fallthru
          _
      $region64: #{tpu_custom_call.1} parent=5 // pred_fallthru
        _
    $region6: #{tpu_custom_call.1} parent=1 // loop_footer
      %s21 = sadd.s32 1, %s17
    $region7: #{tpu_custom_call.1} parent=1 // loop_footer_branch
      %16 = sbr.rel target = $region3
    $region8: #{tpu_custom_call.1} parent=1 // loop_exit
      _
    %1214 = vsyncpa [#allocation3], 1
    %s1215 = scalar_lea.sflag [#allocation3], 1
    %1216 = vsyncpa %s1215, 1
    %1217 = vsyncpa [#allocation4], 1
    %s1218 = scalar_lea.sflag [#allocation4], 1
    %1219 = vsyncpa %s1218, 1
    %1220 = vsyncpa [#allocation6], 1
    %1221 = vsyncpa [#allocation9], 1

</llo_original>
